<compile_context>
chip_gen: v6e
topology: v6e:2x2x1
jax: 0.10.0
libtpu: 0.0.40
codegen_flags: <defaults>
</compile_context>

<pallas_src>
import functools

import jax
import jax.numpy as jnp
from jax.experimental import pallas as pl
from jax.experimental.pallas import tpu as pltpu


def _round_up(x, m):
    return (x + m - 1) // m * m


def _temporal_block_kernel(x_ref, w1_ref, b1_ref, w2_ref, b2_ref, out_ref,
                           x_win, h_win, *, k_taps, dilation, pad, pad_al,
                           tl, c, cp):
    """One (batch n, length-tile li) grid step.

    x_ref:   (1, C, TL)   f32 input tile (original channel-major layout)
    w*_ref:  (K*Cp, Cp)   bf16 fused per-tap weights (row block k = tap k)
    b*_ref:  (1, Cp)      f32 bias
    out_ref: (1, C, TL)   f32 output tile (channel-major)
    x_win/h_win: VMEM (pad_al + TL, Cp) bf16 scratch; rows [pad_al-pad, pad_al)
                 hold the previous tile's last `pad` rows (causal halo carry).
    """
    li = pl.program_id(1)

    # First length-tile of every batch: causal zero padding in the carry region.
    @pl.when(li == 0)
    def _():
        zeros = jnp.zeros((pad, cp), x_win.dtype)
        x_win[pad_al - pad:pad_al, :] = zeros
        h_win[pad_al - pad:pad_al, :] = zeros

    # ---- load (C, TL), channel-pad on the sublane axis, transpose in-kernel ----
    x_ct = x_ref[0]                                        # (C, TL) f32
    if cp > c:
        x_cp_t = jnp.concatenate(
            [x_ct, jnp.zeros((cp - c, tl), x_ct.dtype)], axis=0)   # (Cp, TL)
    else:
        x_cp_t = x_ct
    x_tl_cp = jnp.transpose(x_cp_t)                        # (TL, Cp) f32, XLU
    x_win[pad_al:, :] = x_tl_cp.astype(x_win.dtype)        # aligned, lane-dense

    # ---- conv1 (causal, dilated): single fused im2col matmul + ReLU ----
    cols1 = [x_win[pad_al - (k_taps - 1 - k) * dilation:
                   pad_al - (k_taps - 1 - k) * dilation + tl, :]
             for k in range(k_taps)]
    im2col1 = jnp.concatenate(cols1, axis=1)               # (TL, K*Cp) bf16
    h = jnp.dot(im2col1, w1_ref[...], preferred_element_type=jnp.float32)
    h = jnp.maximum(h + b1_ref[...], 0.0)                  # (TL, Cp) f32

    # carry x halo for the next length tile (conv1 reads on x_win are done)
    x_win[pad_al - pad:pad_al, :] = x_win[pad_al + tl - pad:pad_al + tl, :]

    h_win[pad_al:, :] = h.astype(h_win.dtype)

    # ---- conv2 (causal, dilated): fused im2col matmul + ReLU ----
    cols2 = [h_win[pad_al - (k_taps - 1 - k) * dilation:
                   pad_al - (k_taps - 1 - k) * dilation + tl, :]
             for k in range(k_taps)]
    im2col2 = jnp.concatenate(cols2, axis=1)
    out2 = jnp.dot(im2col2, w2_ref[...], preferred_element_type=jnp.float32)
    out2 = jnp.maximum(out2 + b2_ref[...], 0.0)            # (TL, Cp) f32

    # ---- back to channel-major, residual add + final ReLU in f32 ----
    # (downsample is None: n_in == n_out, residual is the raw input tile)
    out2_ct = jnp.transpose(out2)                          # (Cp, TL) f32, XLU
    out_ref[0] = jnp.maximum(out2_ct[:c, :] + x_ct, 0.0).astype(out_ref.dtype)

    # carry h halo for the next length tile
    h_win[pad_al - pad:pad_al, :] = h_win[pad_al + tl - pad:pad_al + tl, :]


def temporal_block_pallas(x_ncl, w1, b1, w2, b2, *, kernel_size, stride,
                          dilation, padding, tile_l=512):
    """x_ncl: (N, C, L) f32; w*: (Cout, Cin, K) effective (weight-normed) f32."""
    N, C, L = x_ncl.shape
    K = kernel_size
    if stride != 1:
        raise ValueError("kernel assumes stride == 1 (standard TCN block)")
    if padding != (K - 1) * dilation or padding <= 0:
        raise ValueError("kernel assumes causal padding == (K-1)*dilation > 0")
    assert w1.shape == (C, C, K) and w2.shape == (C, C, K), (
        "module requires n_inputs == n_outputs (downsample is None)")

    Cp = _round_up(C, 128)                       # lane-dense channel axis
    tl_cap = _round_up(max(tile_l, 128), 128)    # TL always a multiple of 128
    TL = min(_round_up(L, 128), tl_cap)
    TL = max(TL, _round_up(padding, 128))        # halo carry needs padding <= TL
    Lp = _round_up(L, TL)
    num_lt = Lp // TL
    pad_al = _round_up(padding, 16)              # bf16 packed-sublane aligned

    # Only pad the length axis (cheap); NO host transpose, NO channel inflation.
    x_p = x_ncl if Lp == L else jnp.pad(x_ncl, ((0, 0), (0, 0), (0, Lp - L)))

    def prep(w, b):
        wp = jnp.zeros((Cp, Cp, K), jnp.float32).at[:C, :C, :].set(w)
        wk = jnp.transpose(wp, (2, 1, 0))                # (K, Cin_p, Cout_p)
        wf = wk.reshape(K * Cp, Cp).astype(jnp.bfloat16)
        bp = jnp.zeros((1, Cp), jnp.float32).at[0, :C].set(b)
        return wf, bp

    w1f, b1p = prep(w1, b1)
    w2f, b2p = prep(w2, b2)

    kernel = functools.partial(_temporal_block_kernel, k_taps=K,
                               dilation=dilation, pad=padding,
                               pad_al=pad_al, tl=TL, c=C, cp=Cp)

    flops = 2 * N * Lp * Cp * (2 * K * Cp)               # two convs, 2 flop/MAC
    bytes_accessed = (2 * N * C * Lp * 4                 # x in + out
                      + 2 * K * Cp * Cp * 2 + 2 * Cp * 4)

    out_p = pl.pallas_call(
        kernel,
        out_shape=jax.ShapeDtypeStruct((N, C, Lp), jnp.float32),
        grid_spec=pltpu.PrefetchScalarGridSpec(
            num_scalar_prefetch=0,
            grid=(N, num_lt),
            in_specs=[
                pl.BlockSpec((1, C, TL), lambda n, l: (n, 0, l)),
                pl.BlockSpec((K * Cp, Cp), lambda n, l: (0, 0)),
                pl.BlockSpec((1, Cp), lambda n, l: (0, 0)),
                pl.BlockSpec((K * Cp, Cp), lambda n, l: (0, 0)),
                pl.BlockSpec((1, Cp), lambda n, l: (0, 0)),
            ],
            out_specs=pl.BlockSpec((1, C, TL), lambda n, l: (n, 0, l)),
            scratch_shapes=[pltpu.VMEM((pad_al + TL, Cp), jnp.bfloat16),
                            pltpu.VMEM((pad_al + TL, Cp), jnp.bfloat16)],
        ),
        compiler_params=pltpu.CompilerParams(
            dimension_semantics=("parallel", "arbitrary"),
            vmem_limit_bytes=32 * 1024 * 1024),
        cost_estimate=pl.CostEstimate(flops=flops, transcendentals=0,
                                      bytes_accessed=bytes_accessed),
    )(x_p, w1f, b1p, w2f, b2p)

    return out_p if Lp == L else out_p[:, :, :L]


# ----------------------------- reference (plain JAX) -----------------------------
def _conv1d_ref(x, w, b, stride, padding, dilation):
    # x: (N, Cin, L), w: (Cout, Cin, K)  — matches torch.nn.Conv1d
    out = jax.lax.conv_general_dilated(
        x, w, window_strides=(stride,), padding=[(padding, padding)],
        rhs_dilation=(dilation,), dimension_numbers=("NCH", "OIH", "NCH"))
    return out + b[None, :, None]


def temporal_block_ref(x, w1, b1, w2, b2, *, stride, padding, dilation):
    h = _conv1d_ref(x, w1, b1, stride, padding, dilation)
    h = h[:, :, :-padding]                       # Chomp1d
    h = jnp.maximum(h, 0.0)                      # ReLU (dropout = identity)
    h = _conv1d_ref(h, w2, b2, stride, padding, dilation)
    h = h[:, :, :-padding]
    h = jnp.maximum(h, 0.0)
    return jnp.maximum(h + x, 0.0)               # residual + final ReLU


def _weight_norm(v, g):
    # torch weight_norm default dim=0: norm over (in_ch, k) per output channel
    norm = jnp.sqrt(jnp.sum(v * v, axis=(1, 2), keepdims=True))
    return g * v / norm


if __name__ == "__main__":
    # Small, module-consistent shapes: n_inputs == n_outputs (required for the
    # reference forward to type-check), causal TCN padding.  L=300 with
    # tile_l=128 exercises multiple length tiles, the padded tail tile, the
    # cross-tile causal carry, and the in-kernel transposes.
    N, C, L = 2, 8, 300
    kernel_size = 3
    stride = 1
    dilation = 2
    padding = (kernel_size - 1) * dilation       # 4

    key = jax.random.PRNGKey(0)
    kx, kv1, kg1, kb1, kv2, kg2, kb2 = jax.random.split(key, 7)

    x = jax.random.normal(kx, (N, C, L), jnp.float32)

    # weight_norm parameters: v (Cout, Cin, K), g (Cout, 1, 1), bias (Cout,)
    v1 = 0.01 * jax.random.normal(kv1, (C, C, kernel_size), jnp.float32)
    g1 = 1.0 + 0.1 * jax.random.normal(kg1, (C, 1, 1), jnp.float32)
    b1 = 0.1 * jax.random.normal(kb1, (C,), jnp.float32)
    v2 = 0.01 * jax.random.normal(kv2, (C, C, kernel_size), jnp.float32)
    g2 = 1.0 + 0.1 * jax.random.normal(kg2, (C, 1, 1), jnp.float32)
    b2 = 0.1 * jax.random.normal(kb2, (C,), jnp.float32)

    w1 = _weight_norm(v1, g1)
    w2 = _weight_norm(v2, g2)

    out = temporal_block_pallas(x, w1, b1, w2, b2,
                                kernel_size=kernel_size,
                                stride=stride,
                                dilation=dilation,
                                padding=padding,
                                tile_l=128)
    out = jax.block_until_ready(out)

    ref = temporal_block_ref(x, w1, b1, w2, b2,
                             stride=stride, padding=padding, dilation=dilation)
    ref = jax.block_until_ready(ref)

    assert out.shape == (N, C, L), out.shape
    # bf16 matmul operands (f32 accumulation) -> relaxed tolerance vs f32 ref.
    assert jnp.allclose(out, ref, rtol=3e-2, atol=3e-2), (
        float(jnp.max(jnp.abs(out - ref))))

    print("KERNEL_OK")
</pallas_src>

<mosaic_0001>
module attributes {stable_mosaic.version = 11 : i64} {
  func.func @_temporal_block_kernel(%arg0: i32, %arg1: i32, %arg2: memref<1x8x128xf32, #tpu.memory_space<vmem>>, %arg3: memref<384x128xbf16, #tpu.memory_space<vmem>>, %arg4: memref<1x128xf32, #tpu.memory_space<vmem>>, %arg5: memref<384x128xbf16, #tpu.memory_space<vmem>>, %arg6: memref<1x128xf32, #tpu.memory_space<vmem>>, %arg7: memref<1x8x128xf32, #tpu.memory_space<vmem>>, %arg8: memref<144x128xbf16, #tpu.memory_space<vmem>>, %arg9: memref<144x128xbf16, #tpu.memory_space<vmem>>) attributes {dimension_semantics = [#tpu.dimension_semantics<parallel>, #tpu.dimension_semantics<arbitrary>], iteration_bounds = array<i64: 2, 3>, scalar_prefetch = 0 : i64, scratch_operands = 2 : i64, tpu.core_type = #tpu.core_type<tc>, window_params = [{transform_indices = @transform_0, window_bounds = array<i64: 1, 8, 128>}, {pipeline_mode = #tpu.pipeline_mode<synchronous>, transform_indices = @transform_1, window_bounds = array<i64: 384, 128>}, {pipeline_mode = #tpu.pipeline_mode<synchronous>, transform_indices = @transform_2, window_bounds = array<i64: 1, 128>}, {pipeline_mode = #tpu.pipeline_mode<synchronous>, transform_indices = @transform_3, window_bounds = array<i64: 384, 128>}, {pipeline_mode = #tpu.pipeline_mode<synchronous>, transform_indices = @transform_4, window_bounds = array<i64: 1, 128>}, {transform_indices = @transform_5, window_bounds = array<i64: 1, 8, 128>}]} {
    %c0_i32 = arith.constant 0 : i32
    %0 = arith.cmpi eq, %arg1, %c0_i32 : i32
    %1 = arith.extui %0 : i1 to i32
    %c0_i32_0 = arith.constant 0 : i32
    %2 = arith.cmpi ne, %1, %c0_i32_0 : i32
    scf.if %2 {
      %cst_39 = arith.constant 0.000000e+00 : bf16
      %46 = vector.broadcast %cst_39 : bf16 to vector<4x128xbf16>
      %c12_40 = arith.constant 12 : index
      %c0_41 = arith.constant 0 : index
      %47 = vector.load %arg8[%c12_40, %c0_41] : memref<144x128xbf16, #tpu.memory_space<vmem>>, vector<4x128xbf16>
      tpu.vector_store %arg8[%c12_40, %c0_41], %46 {strides = array<i32>} : memref<144x128xbf16, #tpu.memory_space<vmem>>, vector<4x128xbf16>,
      %c12_42 = arith.constant 12 : index
      %c0_43 = arith.constant 0 : index
      %48 = vector.load %arg9[%c12_42, %c0_43] : memref<144x128xbf16, #tpu.memory_space<vmem>>, vector<4x128xbf16>
      tpu.vector_store %arg9[%c12_42, %c0_43], %46 {strides = array<i32>} : memref<144x128xbf16, #tpu.memory_space<vmem>>, vector<4x128xbf16>,
    } else {
    }
    %c0 = arith.constant 0 : index
    %c0_1 = arith.constant 0 : index
    %c0_2 = arith.constant 0 : index
    %3 = vector.load %arg2[%c0, %c0_1, %c0_2] : memref<1x8x128xf32, #tpu.memory_space<vmem>>, vector<1x8x128xf32>
    %4 = vector.shape_cast %3 : vector<1x8x128xf32> to vector<8x128xf32>
    %cst = arith.constant 0.000000e+00 : f32
    %5 = vector.broadcast %cst : f32 to vector<120x128xf32>
    %6 = tpu.concatenate %4, %5 in 0 : vector<8x128xf32>, vector<120x128xf32> -> vector<128x128xf32>
    %7 = tpu.transpose %6, [1, 0] : vector<128x128xf32> -> vector<128x128xf32>
    %8 = arith.truncf %7 : vector<128x128xf32> to vector<128x128xbf16>
    %c16 = arith.constant 16 : index
    %c0_3 = arith.constant 0 : index
    %9 = vector.load %arg8[%c16, %c0_3] : memref<144x128xbf16, #tpu.memory_space<vmem>>, vector<128x128xbf16>
    tpu.vector_store %arg8[%c16, %c0_3], %8 {strides = array<i32>} : memref<144x128xbf16, #tpu.memory_space<vmem>>, vector<128x128xbf16>,
    %c12 = arith.constant 12 : index
    %c0_4 = arith.constant 0 : index
    %10 = vector.load %arg8[%c12, %c0_4] : memref<144x128xbf16, #tpu.memory_space<vmem>>, vector<128x128xbf16>
    %c14 = arith.constant 14 : index
    %c0_5 = arith.constant 0 : index
    %11 = vector.load %arg8[%c14, %c0_5] : memref<144x128xbf16, #tpu.memory_space<vmem>>, vector<128x128xbf16>
    %c16_6 = arith.constant 16 : index
    %c0_7 = arith.constant 0 : index
    %12 = vector.load %arg8[%c16_6, %c0_7] : memref<144x128xbf16, #tpu.memory_space<vmem>>, vector<128x128xbf16>
    %13 = tpu.concatenate %10, %11, %12 in 1 : vector<128x128xbf16>, vector<128x128xbf16>, vector<128x128xbf16> -> vector<128x384xbf16>
    %c0_8 = arith.constant 0 : index
    %c0_9 = arith.constant 0 : index
    %14 = vector.load %arg3[%c0_8, %c0_9] : memref<384x128xbf16, #tpu.memory_space<vmem>>, vector<384x128xbf16>
    %cst_10 = arith.constant dense<0.000000e+00> : vector<128x128xf32>
    %15 = tpu.matmul %13, %14, %cst_10 {dimension_numbers = #tpu.dot_dimension_numbers<[1], [0], [0], [1], [0, 0, 1, 1], [], []>} : vector<128x384xbf16>, vector<384x128xbf16>, vector<128x128xf32> -> vector<128x128xf32>
    %c0_11 = arith.constant 0 : index
    %c0_12 = arith.constant 0 : index
    %16 = vector.load %arg4[%c0_11, %c0_12] : memref<1x128xf32, #tpu.memory_space<vmem>>, vector<1x128xf32>
    %17 = vector.broadcast %16 : vector<1x128xf32> to vector<128x128xf32>
    %18 = arith.addf %15, %17 : vector<128x128xf32>
    %cst_13 = arith.constant 0.000000e+00 : f32
    %19 = vector.broadcast %cst_13 : f32 to vector<128x128xf32>
    %20 = arith.maximumf %18, %19 : vector<128x128xf32>
    %c140 = arith.constant 140 : index
    %c0_14 = arith.constant 0 : index
    %21 = vector.load %arg8[%c140, %c0_14] : memref<144x128xbf16, #tpu.memory_space<vmem>>, vector<4x128xbf16>
    %c12_15 = arith.constant 12 : index
    %c0_16 = arith.constant 0 : index
    %22 = vector.load %arg8[%c12_15, %c0_16] : memref<144x128xbf16, #tpu.memory_space<vmem>>, vector<4x128xbf16>
    tpu.vector_store %arg8[%c12_15, %c0_16], %21 {strides = array<i32>} : memref<144x128xbf16, #tpu.memory_space<vmem>>, vector<4x128xbf16>,
    %23 = arith.truncf %20 : vector<128x128xf32> to vector<128x128xbf16>
    %c16_17 = arith.constant 16 : index
    %c0_18 = arith.constant 0 : index
    %24 = vector.load %arg9[%c16_17, %c0_18] : memref<144x128xbf16, #tpu.memory_space<vmem>>, vector<128x128xbf16>
    tpu.vector_store %arg9[%c16_17, %c0_18], %23 {strides = array<i32>} : memref<144x128xbf16, #tpu.memory_space<vmem>>, vector<128x128xbf16>,
    %c12_19 = arith.constant 12 : index
    %c0_20 = arith.constant 0 : index
    %25 = vector.load %arg9[%c12_19, %c0_20] : memref<144x128xbf16, #tpu.memory_space<vmem>>, vector<128x128xbf16>
    %c14_21 = arith.constant 14 : index
    %c0_22 = arith.constant 0 : index
    %26 = vector.load %arg9[%c14_21, %c0_22] : memref<144x128xbf16, #tpu.memory_space<vmem>>, vector<128x128xbf16>
    %c16_23 = arith.constant 16 : index
    %c0_24 = arith.constant 0 : index
    %27 = vector.load %arg9[%c16_23, %c0_24] : memref<144x128xbf16, #tpu.memory_space<vmem>>, vector<128x128xbf16>
    %28 = tpu.concatenate %25, %26, %27 in 1 : vector<128x128xbf16>, vector<128x128xbf16>, vector<128x128xbf16> -> vector<128x384xbf16>
    %c0_25 = arith.constant 0 : index
    %c0_26 = arith.constant 0 : index
    %29 = vector.load %arg5[%c0_25, %c0_26] : memref<384x128xbf16, #tpu.memory_space<vmem>>, vector<384x128xbf16>
    %cst_27 = arith.constant dense<0.000000e+00> : vector<128x128xf32>
    %30 = tpu.matmul %28, %29, %cst_27 {dimension_numbers = #tpu.dot_dimension_numbers<[1], [0], [0], [1], [0, 0, 1, 1], [], []>} : vector<128x384xbf16>, vector<384x128xbf16>, vector<128x128xf32> -> vector<128x128xf32>
    %c0_28 = arith.constant 0 : index
    %c0_29 = arith.constant 0 : index
    %31 = vector.load %arg6[%c0_28, %c0_29] : memref<1x128xf32, #tpu.memory_space<vmem>>, vector<1x128xf32>
    %32 = vector.broadcast %31 : vector<1x128xf32> to vector<128x128xf32>
    %33 = arith.addf %30, %32 : vector<128x128xf32>
    %cst_30 = arith.constant 0.000000e+00 : f32
    %34 = vector.broadcast %cst_30 : f32 to vector<128x128xf32>
    %35 = arith.maximumf %33, %34 : vector<128x128xf32>
    %36 = tpu.transpose %35, [1, 0] : vector<128x128xf32> -> vector<128x128xf32>
    %37 = vector.extract_strided_slice %36 {offsets = [0, 0], sizes = [8, 128], strides = [1, 1]} : vector<128x128xf32> to vector<8x128xf32>
    %38 = arith.addf %37, %4 : vector<8x128xf32>
    %cst_31 = arith.constant 0.000000e+00 : f32
    %39 = vector.broadcast %cst_31 : f32 to vector<8x128xf32>
    %40 = arith.maximumf %38, %39 : vector<8x128xf32>
    %c0_32 = arith.constant 0 : index
    %c0_33 = arith.constant 0 : index
    %c0_34 = arith.constant 0 : index
    %41 = vector.load %arg7[%c0_32, %c0_33, %c0_34] : memref<1x8x128xf32, #tpu.memory_space<vmem>>, vector<1x8x128xf32>
    %42 = vector.shape_cast %41 : vector<1x8x128xf32> to vector<8x128xf32>
    %43 = vector.shape_cast %40 : vector<8x128xf32> to vector<1x8x128xf32>
    tpu.vector_store %arg7[%c0_32, %c0_33, %c0_34], %43 {strides = array<i32>} : memref<1x8x128xf32, #tpu.memory_space<vmem>>, vector<1x8x128xf32>,
    %c140_35 = arith.constant 140 : index
    %c0_36 = arith.constant 0 : index
    %44 = vector.load %arg9[%c140_35, %c0_36] : memref<144x128xbf16, #tpu.memory_space<vmem>>, vector<4x128xbf16>
    %c12_37 = arith.constant 12 : index
    %c0_38 = arith.constant 0 : index
    %45 = vector.load %arg9[%c12_37, %c0_38] : memref<144x128xbf16, #tpu.memory_space<vmem>>, vector<4x128xbf16>
    tpu.vector_store %arg9[%c12_37, %c0_38], %44 {strides = array<i32>} : memref<144x128xbf16, #tpu.memory_space<vmem>>, vector<4x128xbf16>,
    return
  }
  func.func @transform_0(%arg0: i32, %arg1: i32) -> (i32, i32, i32) {
    %c0_i32 = arith.constant 0 : i32
    %c0_i32_0 = arith.constant 0 : i32
    return %arg0, %c0_i32, %arg1 : i32, i32, i32
  }
  func.func @transform_1(%arg0: i32, %arg1: i32) -> (i32, i32) {
    %c0_i32 = arith.constant 0 : i32
    %c0_i32_0 = arith.constant 0 : i32
    %c0_i32_1 = arith.constant 0 : i32
    return %c0_i32, %c0_i32_0 : i32, i32
  }
  func.func @transform_2(%arg0: i32, %arg1: i32) -> (i32, i32) {
    %c0_i32 = arith.constant 0 : i32
    %c0_i32_0 = arith.constant 0 : i32
    %c0_i32_1 = arith.constant 0 : i32
    return %c0_i32, %c0_i32_0 : i32, i32
  }
  func.func @transform_3(%arg0: i32, %arg1: i32) -> (i32, i32) {
    %c0_i32 = arith.constant 0 : i32
    %c0_i32_0 = arith.constant 0 : i32
    %c0_i32_1 = arith.constant 0 : i32
    return %c0_i32, %c0_i32_0 : i32, i32
  }
  func.func @transform_4(%arg0: i32, %arg1: i32) -> (i32, i32) {
    %c0_i32 = arith.constant 0 : i32
    %c0_i32_0 = arith.constant 0 : i32
    %c0_i32_1 = arith.constant 0 : i32
    return %c0_i32, %c0_i32_0 : i32, i32
  }
  func.func @transform_5(%arg0: i32, %arg1: i32) -> (i32, i32, i32) {
    %c0_i32 = arith.constant 0 : i32
    %c0_i32_0 = arith.constant 0 : i32
    return %arg0, %c0_i32, %arg1 : i32, i32, i32
  }
}

</mosaic_0001>

<llo_original>
// kernel: tpu_custom_call.1
$region0: #{tpu_custom_call.1}
  #allocation0 [shape = 'u32[]', space=smem, size = 0x4, offset = 0x4, fixed_abs, tag = 'smem constant byte address 0x4 - core index']
  #allocation1 [shape = 'u32[144,128]{1,0:T(1,128)}', space=vmem, size = 0x12000, scoped, tag = 'internal scratch']
  #allocation2 [shape = 'bf16[144,128]{1,0:T(8,128)(2,1)}', space=vmem, size = 0x9000, scoped, tag = 'scratch operand']
  #allocation3 [shape = 'bf16[144,128]{1,0:T(8,128)(2,1)}', space=vmem, size = 0x9000, scoped, tag = 'scratch operand']
  %s0 = inlined_call_operand.hbm [shape: f32[2,8,384], index: 0, kind: input, shape index: {}]
  %s1 = inlined_call_operand.hbm [shape: bf16[384,128], index: 1, kind: input, shape index: {}]
  %s2 = inlined_call_operand.vmem [shape: f32[1,128], index: 2, kind: input, shape index: {}]
  %s3 = inlined_call_operand.hbm [shape: bf16[384,128], index: 3, kind: input, shape index: {}]
  %s4 = inlined_call_operand.vmem [shape: f32[1,128], index: 4, kind: input, shape index: {}]
  %s5 = inlined_call_operand.hbm [shape: f32[2,8,384], index: 5, kind: output, shape index: {}]
  %s6 = sld [smem:[#allocation0]]
  $region69: #{tpu_custom_call.1} parent=0
    _
  %s8 = ssub.s32 1, %s6
  %s9 = scalar_select 0, %s8, %s6
  $region1: #{tpu_custom_call.1} parent=0
    #allocation4 [shape = 'u8[8192]{0}', space=vmem, size = 0x2000, scoped, tag = 'input window, operand 0']
    #allocation5 [shape = 's32[2]{0}', space=sflag, size = 0x8, scoped, tag = 'scoped memory for tpu_custom_call.1']
    #allocation6 [shape = 's32[2]{0}', space=sflag, size = 0x8, scoped, tag = 'scoped memory for tpu_custom_call.1']
    #allocation7 [shape = 'u8[98304]{0}', space=vmem, size = 0x18000, scoped, tag = 'input window, operand 1, single buffered']
    #allocation8 [shape = 's32[1]{0}', space=sflag, size = 0x4, scoped, tag = 'scoped memory for tpu_custom_call.1']
    #allocation9 [shape = 'u8[98304]{0}', space=vmem, size = 0x18000, scoped, tag = 'input window, operand 3, single buffered']
    #allocation10 [shape = 'u8[8192]{0}', space=vmem, size = 0x2000, scoped, tag = 'output window, operand 0']
    %10 = vsyncpa [#allocation5], 0
    %s11 = scalar_lea.sflag [#allocation5], 1
    %12 = vsyncpa %s11, 0
    %13 = vsyncpa [#allocation8], 0
    %14 = vsyncpa [#allocation6], 0
    %s15 = scalar_lea.sflag [#allocation6], 1
    %16 = vsyncpa %s15, 0
    loop: start=0, step=1, limit=8
    $region2: #{tpu_custom_call.1} parent=1 // loop_pre_header
      _
    $region3: #{tpu_custom_call.1} parent=1 // loop_header
      %s18 = sphi 0, %s22
      %p19 = scmp.ge.s32.totalorder %s18, 8
      %s25 = sphi 0, %s37
      %s26 = sphi 0, %s33
      %s27 = sphi 0, %s25
      %s28 = sphi 0, %s26
      %s29 = sphi 0, %s27
      %s30 = sphi 0, %s28
      %s42 = sphi 0, %s44
      %s45 = sphi 0, %s42
      %s46 = sphi 0, %s45
      %s62 = sphi 0, %s46
      %s66 = sphi 0, %s66
      %s68 = sphi 0, %s66
      %s69 = sphi 0, %s68
      %s83 = sphi 0, %s69
      %s87 = sphi 0, %s87
      %s89 = sphi 0, %s87
      %s90 = sphi 0, %s89
      %s104 = sphi 0, %s90
      %s108 = sphi 0, %s108
      %s110 = sphi 0, %s108
      %s111 = sphi 0, %s110
      %s125 = sphi 0, %s111
      %s129 = sphi 0, %s129
      %s131 = sphi 0, %s129
      %s132 = sphi 0, %s131
      %s146 = sphi 0, %s132
      %s154 = sphi 0, %s156
      %s157 = sphi 0, %s154
      %s158 = sphi 0, %s157
      %s174 = sphi 0, %s158
    $region4: #{tpu_custom_call.1} parent=1 // loop_header_branch
      %21 = sbr.rel (%p19) target = $region8
    $region5: #{tpu_custom_call.1} parent=1 // loop_body
      %s23 = ssub.s32 %s18, 1
      %s24 = ssub.s32 %s18, 2
      %s31 = sadd.s32 1, %s26
      %p32 = scmp.ge.s32.totalorder %s31, 3
      %s33 = scalar_select %p32, 0, %s31
      %s34 = sadd.s32 1, %s25
      %s35 = scalar_select %p32, %s34, %s25
      %p36 = scmp.ge.s32.totalorder %s35, 2
      %s37 = scalar_select %p36, 0, %s35
      %s38 = ssub.s32 %s25, %s37
      %s39 = ssub.s32 %s26, %s33
      %s40 = sor.u32 %s38, %s39
      %p41 = scmp.eq.s32.totalorder %s40, 0
      %s43 = sadd.s32 %s42, 1
      %s44 = scalar_select %p41, %s42, %s43
      %p47 = pneg %p41
      %p48 = scmp.eq.s32.totalorder %s18, 5
      %p49 = por %p47, %p48
      %p50 = scmp.ne.s32.totalorder %s42, %s45
      %p51 = scmp.eq.s32.totalorder %s18, 0
      %p52 = por %p50, %p51
      %p53 = scmp.ne.s32.totalorder %s42, %s45
      %p54 = scmp.eq.s32.totalorder %s23, 5
      %p55 = por %p53, %p54
      %p56 = scmp.ne.s32.totalorder %s45, %s46
      %p57 = scmp.eq.s32.totalorder %s23, 0
      %p58 = por %p56, %p57
      %p59 = scmp.ne.s32.totalorder %s45, %s46
      %p60 = scmp.eq.s32.totalorder %s24, 5
      %p61 = por %p59, %p60
      %p63 = scmp.ne.s32.totalorder %s46, %s62
      %p64 = scmp.eq.s32.totalorder %s24, 0
      %p65 = por %p63, %p64
      %s67 = sadd.s32 %s66, 1
      %p70 = scmp.eq.s32.totalorder %s18, 5
      %p71 = scmp.ne.s32.totalorder %s66, %s68
      %p72 = scmp.eq.s32.totalorder %s18, 0
      %p73 = por %p71, %p72
      %p74 = scmp.ne.s32.totalorder %s66, %s68
      %p75 = scmp.eq.s32.totalorder %s23, 5
      %p76 = por %p74, %p75
      %p77 = scmp.ne.s32.totalorder %s68, %s69
      %p78 = scmp.eq.s32.totalorder %s23, 0
      %p79 = por %p77, %p78
      %p80 = scmp.ne.s32.totalorder %s68, %s69
      %p81 = scmp.eq.s32.totalorder %s24, 5
      %p82 = por %p80, %p81
      %p84 = scmp.ne.s32.totalorder %s69, %s83
      %p85 = scmp.eq.s32.totalorder %s24, 0
      %p86 = por %p84, %p85
      %s88 = sadd.s32 %s87, 1
      %p91 = scmp.eq.s32.totalorder %s18, 5
      %p92 = scmp.ne.s32.totalorder %s87, %s89
      %p93 = scmp.eq.s32.totalorder %s18, 0
      %p94 = por %p92, %p93
      %p95 = scmp.ne.s32.totalorder %s87, %s89
      %p96 = scmp.eq.s32.totalorder %s23, 5
      %p97 = por %p95, %p96
      %p98 = scmp.ne.s32.totalorder %s89, %s90
      %p99 = scmp.eq.s32.totalorder %s23, 0
      %p100 = por %p98, %p99
      %p101 = scmp.ne.s32.totalorder %s89, %s90
      %p102 = scmp.eq.s32.totalorder %s24, 5
      %p103 = por %p101, %p102
      %p105 = scmp.ne.s32.totalorder %s90, %s104
      %p106 = scmp.eq.s32.totalorder %s24, 0
      %p107 = por %p105, %p106
      %s109 = sadd.s32 %s108, 1
      %p112 = scmp.eq.s32.totalorder %s18, 5
      %p113 = scmp.ne.s32.totalorder %s108, %s110
      %p114 = scmp.eq.s32.totalorder %s18, 0
      %p115 = por %p113, %p114
      %p116 = scmp.ne.s32.totalorder %s108, %s110
      %p117 = scmp.eq.s32.totalorder %s23, 5
      %p118 = por %p116, %p117
      %p119 = scmp.ne.s32.totalorder %s110, %s111
      %p120 = scmp.eq.s32.totalorder %s23, 0
      %p121 = por %p119, %p120
      %p122 = scmp.ne.s32.totalorder %s110, %s111
      %p123 = scmp.eq.s32.totalorder %s24, 5
      %p124 = por %p122, %p123
      %p126 = scmp.ne.s32.totalorder %s111, %s125
      %p127 = scmp.eq.s32.totalorder %s24, 0
      %p128 = por %p126, %p127
      %s130 = sadd.s32 %s129, 1
      %p133 = scmp.eq.s32.totalorder %s18, 5
      %p134 = scmp.ne.s32.totalorder %s129, %s131
      %p135 = scmp.eq.s32.totalorder %s18, 0
      %p136 = por %p134, %p135
      %p137 = scmp.ne.s32.totalorder %s129, %s131
      %p138 = scmp.eq.s32.totalorder %s23, 5
      %p139 = por %p137, %p138
      %p140 = scmp.ne.s32.totalorder %s131, %s132
      %p141 = scmp.eq.s32.totalorder %s23, 0
      %p142 = por %p140, %p141
      %p143 = scmp.ne.s32.totalorder %s131, %s132
      %p144 = scmp.eq.s32.totalorder %s24, 5
      %p145 = por %p143, %p144
      %p147 = scmp.ne.s32.totalorder %s132, %s146
      %p148 = scmp.eq.s32.totalorder %s24, 0
      %p149 = por %p147, %p148
      %s150 = ssub.s32 %s25, %s37
      %s151 = ssub.s32 %s26, %s33
      %s152 = sor.u32 %s150, %s151
      %p153 = scmp.eq.s32.totalorder %s152, 0
      %s155 = sadd.s32 %s154, 1
      %s156 = scalar_select %p153, %s154, %s155
      %p159 = pneg %p153
      %p160 = scmp.eq.s32.totalorder %s18, 5
      %p161 = por %p159, %p160
      %p162 = scmp.ne.s32.totalorder %s154, %s157
      %p163 = scmp.eq.s32.totalorder %s18, 0
      %p164 = por %p162, %p163
      %p165 = scmp.ne.s32.totalorder %s154, %s157
      %p166 = scmp.eq.s32.totalorder %s23, 5
      %p167 = por %p165, %p166
      %p168 = scmp.ne.s32.totalorder %s157, %s158
      %p169 = scmp.eq.s32.totalorder %s23, 0
      %p170 = por %p168, %p169
      %p171 = scmp.ne.s32.totalorder %s157, %s158
      %p172 = scmp.eq.s32.totalorder %s24, 5
      %p173 = por %p171, %p172
      %p175 = scmp.ne.s32.totalorder %s158, %s174
      %p176 = scmp.eq.s32.totalorder %s24, 0
      %p177 = por %p175, %p176
      %p178 = scmp.le.s32.totalorder 1, %s18
      %p179 = scmp.lt.s32.totalorder %s18, 7
      %p180 = pnand %p178, %p179
      %p181 = pneg %p180
      // Predicated region
      $region9: #{tpu_custom_call.1} parent=5 // pred_check
        _
      $region10: #{tpu_custom_call.1} parent=5 // pred_check_branch
        %183 = sbr.rel (%p180) target = $region12
      $region11: #{tpu_custom_call.1} parent=5 // pred_region
        %s184 = ssub.s32 %s18, 1
        // Predicated region
        $region13: #{tpu_custom_call.1} parent=11 // pred_check
          %p185 = pneg %p79
        $region14: #{tpu_custom_call.1} parent=11 // pred_check_branch
          %187 = sbr.rel (%p185) target = $region16
        $region15: #{tpu_custom_call.1} parent=11 // pred_region
          %s189 = ssub.s32 3072, 3072
          %190 = vsyncadd [#allocation8], %s189
          %s191 = sshll.u32 [#allocation7], 4
          %s192 = int_to_ptr.vmem [resolvable:$true] %s191
          %197 = dma.hbm_to_vmem [thread:$0]  %s1, 3072, %s192, [#allocation8], 64, 64, 4
        $region16: #{tpu_custom_call.1} parent=11 // pred_fallthru
          _
        // Predicated region
        $region17: #{tpu_custom_call.1} parent=11 // pred_check
          %p198 = pneg %p100
        $region18: #{tpu_custom_call.1} parent=11 // pred_check_branch
          %200 = sbr.rel (%p198) target = $region20
        $region19: #{tpu_custom_call.1} parent=11 // pred_region
          _
        $region20: #{tpu_custom_call.1} parent=11 // pred_fallthru
          _
        // Predicated region
        $region21: #{tpu_custom_call.1} parent=11 // pred_check
          %p201 = pneg %p121
        $region22: #{tpu_custom_call.1} parent=11 // pred_check_branch
          %203 = sbr.rel (%p201) target = $region24
        $region23: #{tpu_custom_call.1} parent=11 // pred_region
          %s205 = ssub.s32 3072, 3072
          %206 = vsyncadd [#allocation8], %s205
          %s207 = sshll.u32 [#allocation9], 4
          %s208 = int_to_ptr.vmem [resolvable:$true] %s207
          %213 = dma.hbm_to_vmem [thread:$0]  %s3, 3072, %s208, [#allocation8], 64, 64, 4
        $region24: #{tpu_custom_call.1} parent=11 // pred_fallthru
          _
        // Predicated region
        $region25: #{tpu_custom_call.1} parent=11 // pred_check
          %p214 = pneg %p142
        $region26: #{tpu_custom_call.1} parent=11 // pred_check_branch
          %216 = sbr.rel (%p214) target = $region28
        $region27: #{tpu_custom_call.1} parent=11 // pred_region
          _
        $region28: #{tpu_custom_call.1} parent=11 // pred_fallthru
          _
      $region12: #{tpu_custom_call.1} parent=5 // pred_fallthru
        _
      %p217 = scmp.lt.s32.totalorder %s18, 6
      // Predicated region
      $region29: #{tpu_custom_call.1} parent=5 // pred_check
        %p218 = pneg %p217
      $region30: #{tpu_custom_call.1} parent=5 // pred_check_branch
        %220 = sbr.rel (%p218) target = $region32
      $region31: #{tpu_custom_call.1} parent=5 // pred_region
        // Predicated region
        $region33: #{tpu_custom_call.1} parent=31 // pred_check
          %p221 = pneg %p52
        $region34: #{tpu_custom_call.1} parent=31 // pred_check_branch
          %223 = sbr.rel (%p221) target = $region36
        $region35: #{tpu_custom_call.1} parent=31 // pred_region
          %s224 = sand.u32 %s42, 1
          %s225 = scalar_lea.sflag [#allocation5], %s224
          %s226 = sand.u32 %s42, 1
          %s227 = smul.addr %s226, 8
          %s228 = scalar_lea.vmem [#allocation4], %s227
          %s230 = ssub.s32 128, 128
          %231 = vsyncadd %s225, %s230
          %s232 = smul.addr %s25, 3
          %s233 = sadd.s32 %s26, %s232
          %s234 = smul.addr %s233, 128
          %s235 = scalar_lea.hbm %s0, %s234
          %s237 = sshll.u32 %s228, 4
          %s238 = int_to_ptr.vmem [resolvable:$true] %s237
          %240 = dma.hbm_to_vmem [thread:$0]  %s235, 128, %s238, %s225
        $region36: #{tpu_custom_call.1} parent=31 // pred_fallthru
          _
      $region32: #{tpu_custom_call.1} parent=5 // pred_fallthru
        _
      %p241 = scmp.le.s32.totalorder 1, %s18
      %p242 = scmp.lt.s32.totalorder %s18, 7
      %p243 = pnand %p241, %p242
      %p244 = pneg %p243
      // Predicated region
      $region37: #{tpu_custom_call.1} parent=5 // pred_check
        _
      $region38: #{tpu_custom_call.1} parent=5 // pred_check_branch
        %246 = sbr.rel (%p243) target = $region40
      $region39: #{tpu_custom_call.1} parent=5 // pred_region
        %s247 = ssub.s32 %s18, 1
        %s248 = sand.u32 %s45, 1
        %s249 = scalar_lea.sflag [#allocation5], %s248
        %s250 = sand.u32 %s45, 1
        %s251 = smul.addr %s250, 8
        %s252 = scalar_lea.vmem [#allocation4], %s251
        // Predicated region
        $region41: #{tpu_custom_call.1} parent=39 // pred_check
          %p253 = pneg %p58
        $region42: #{tpu_custom_call.1} parent=39 // pred_check_branch
          %255 = sbr.rel (%p253) target = $region44
        $region43: #{tpu_custom_call.1} parent=39 // pred_region
          %256 = dma.done %s249, 128
        $region44: #{tpu_custom_call.1} parent=39 // pred_fallthru
          _
        // Predicated region
        $region45: #{tpu_custom_call.1} parent=39 // pred_check
          %p257 = pneg %p79
        $region46: #{tpu_custom_call.1} parent=39 // pred_check_branch
          %259 = sbr.rel (%p257) target = $region48
        $region47: #{tpu_custom_call.1} parent=39 // pred_region
          %260 = dma.done [#allocation8], 3072
        $region48: #{tpu_custom_call.1} parent=39 // pred_fallthru
          _
        // Predicated region
        $region49: #{tpu_custom_call.1} parent=39 // pred_check
          %p261 = pneg %p121
        $region50: #{tpu_custom_call.1} parent=39 // pred_check_branch
          %263 = sbr.rel (%p261) target = $region52
        $region51: #{tpu_custom_call.1} parent=39 // pred_region
          %264 = dma.done [#allocation8], 3072
        $region52: #{tpu_custom_call.1} parent=39 // pred_fallthru
          _
        %s265 = sand.u32 %s45, 1
        %s266 = scalar_lea.sflag [#allocation5], %s265
        %s267 = sand.u32 %s45, 1
        %s268 = smul.addr %s267, 8
        %s269 = scalar_lea.vmem [#allocation4], %s268
        %p270 = pneg %p58
        %p271 = pneg %p55
        %p272 = pneg %p79
        %p273 = pneg %p76
        %p274 = pneg %p100
        %p275 = pneg %p97
        %p276 = pneg %p121
        %p277 = pneg %p118
        %p278 = pneg %p142
        %p279 = pneg %p139
        %p280 = pneg %p170
        %p281 = pneg %p167
        %s282 = sand.u32 %s157, 1
        %s283 = scalar_lea.sflag [#allocation6], %s282
        %s284 = sand.u32 %s157, 1
        %s285 = smul.addr %s284, 8
        %s286 = scalar_lea.vmem [#allocation10], %s285
        %p288 = scmp.eq.s32.totalorder %s28, 0
        // Predicated region
        $region53: #{tpu_custom_call.1} parent=39 // pred_check
          %p289 = pneg %p288
        $region54: #{tpu_custom_call.1} parent=39 // pred_check_branch
          %291 = sbr.rel (%p289) target = $region56
        $region55: #{tpu_custom_call.1} parent=39 // pred_region
          %292 = vst [vmem:[#allocation2 + $0x4] sm:$0xc] 0
          %293 = vst [vmem:[#allocation3 + $0x4] sm:$0xc] 0
        $region56: #{tpu_custom_call.1} parent=39 // pred_fallthru
          _
        %v294 = vld [vmem:[%s252] sm:$0xff]
        %295 = vxpose.xlu0.b32.start [1/16] %v294, 128
        %296 = vxpose.xlu0.b32.cont [2/16] 0.0, 128
        %297 = vxpose.xlu0.b32.cont [3/16] 0.0, 128
        %298 = vxpose.xlu0.b32.cont [4/16] 0.0, 128
        %299 = vxpose.xlu0.b32.cont [5/16] 0.0, 128
        %300 = vxpose.xlu0.b32.cont [6/16] 0.0, 128
        %301 = vxpose.xlu0.b32.cont [7/16] 0.0, 128
        %302 = vxpose.xlu0.b32.cont [8/16] 0.0, 128
        %303 = vxpose.xlu0.b32.cont [9/16] 0.0, 128
        %304 = vxpose.xlu0.b32.cont [10/16] 0.0, 128
        %305 = vxpose.xlu0.b32.cont [11/16] 0.0, 128
        %306 = vxpose.xlu0.b32.cont [12/16] 0.0, 128
        %307 = vxpose.xlu0.b32.cont [13/16] 0.0, 128
        %308 = vxpose.xlu0.b32.cont [14/16] 0.0, 128
        %309 = vxpose.xlu0.b32.cont [15/16] 0.0, 128
        %310 = vxpose.xlu0.b32.end [16/16] 0.0, 128
        %v311 = vpop.trf.xlu0
        %v312 = vpop.trf.xlu0
        %v313 = vpop.trf.xlu0
        %v314 = vpop.trf.xlu0
        %v315 = vpop.trf.xlu0
        %v316 = vpop.trf.xlu0
        %v317 = vpop.trf.xlu0
        %v318 = vpop.trf.xlu0
        %v319 = vpop.trf.xlu0
        %v320 = vpop.trf.xlu0
        %v321 = vpop.trf.xlu0
        %v322 = vpop.trf.xlu0
        %v323 = vpop.trf.xlu0
        %v324 = vpop.trf.xlu0
        %v325 = vpop.trf.xlu0
        %v326 = vpop.trf.xlu0
        %v327 = vpack.c.bf16 %v312, %v311
        %v328 = vpack.c.bf16 %v314, %v313
        %v329 = vpack.c.bf16 %v316, %v315
        %v330 = vpack.c.bf16 %v318, %v317
        %v331 = vpack.c.bf16 %v320, %v319
        %v332 = vpack.c.bf16 %v322, %v321
        %v333 = vpack.c.bf16 %v324, %v323
        %v334 = vpack.c.bf16 %v326, %v325
        %v343 = vunpack.c.l.b16 %v327
        %v344 = vunpack.c.h.b16 %v327
        %v345 = vunpack.c.l.b16 %v328
        %v346 = vunpack.c.h.b16 %v328
        %v347 = vunpack.c.l.b16 %v329
        %v348 = vunpack.c.h.b16 %v329
        %v349 = vunpack.c.l.b16 %v330
        %v350 = vunpack.c.h.b16 %v330
        %v351 = vunpack.c.l.b16 %v331
        %v352 = vunpack.c.h.b16 %v331
        %v353 = vunpack.c.l.b16 %v332
        %v354 = vunpack.c.h.b16 %v332
        %v355 = vunpack.c.l.b16 %v333
        %v356 = vunpack.c.h.b16 %v333
        %v357 = vunpack.c.l.b16 %v334
        %v358 = vunpack.c.h.b16 %v334
        %v359 = vpack.c.b16 %v343, %v343
        %v360 = vpack.c.b16 %v344, %v344
        %v361 = vpack.c.b16 %v345, %v345
        %v362 = vpack.c.b16 %v346, %v346
        %v363 = vpack.c.b16 %v347, %v347
        %v364 = vpack.c.b16 %v348, %v348
        %v365 = vpack.c.b16 %v349, %v349
        %v366 = vpack.c.b16 %v350, %v350
        %v367 = vpack.c.b16 %v351, %v351
        %v368 = vpack.c.b16 %v352, %v352
        %v369 = vpack.c.b16 %v353, %v353
        %v370 = vpack.c.b16 %v354, %v354
        %v371 = vpack.c.b16 %v355, %v355
        %v372 = vpack.c.b16 %v356, %v356
        %v373 = vpack.c.b16 %v357, %v357
        %v374 = vpack.c.b16 %v358, %v358
        %391 = vst [vmem:[#allocation2 + $0x8] sm:$0xf] %v359
        %392 = vst [vmem:[#allocation2 + $0xc] sm:$0xf] %v360
        %393 = vst [vmem:[#allocation2 + $0x10] sm:$0xf] %v361
        %394 = vst [vmem:[#allocation2 + $0x14] sm:$0xf] %v362
        %395 = vst [vmem:[#allocation2 + $0x18] sm:$0xf] %v363
        %396 = vst [vmem:[#allocation2 + $0x1c] sm:$0xf] %v364
        %397 = vst [vmem:[#allocation2 + $0x20] sm:$0xf] %v365
        %398 = vst [vmem:[#allocation2 + $0x24] sm:$0xf] %v366
        %399 = vst [vmem:[#allocation2 + $0x28] sm:$0xf] %v367
        %400 = vst [vmem:[#allocation2 + $0x2c] sm:$0xf] %v368
        %401 = vst [vmem:[#allocation2 + $0x30] sm:$0xf] %v369
        %402 = vst [vmem:[#allocation2 + $0x34] sm:$0xf] %v370
        %403 = vst [vmem:[#allocation2 + $0x38] sm:$0xf] %v371
        %404 = vst [vmem:[#allocation2 + $0x3c] sm:$0xf] %v372
        %405 = vst [vmem:[#allocation2 + $0x40] sm:$0xf] %v373
        %406 = vst [vmem:[#allocation2 + $0x44] sm:$0xf] %v374
        %v407 = vld [vmem:[#allocation2 + $0x4] sm:$0xc]
        %v408 = vld [vmem:[#allocation2 + $0x8] sm:$0xf]
        %v409 = vld [vmem:[#allocation2 + $0xc] sm:$0xf]
        %v410 = vld [vmem:[#allocation2 + $0x10] sm:$0xf]
        %v411 = vld [vmem:[#allocation2 + $0x14] sm:$0xf]
        %v412 = vld [vmem:[#allocation2 + $0x18] sm:$0xf]
        %v413 = vld [vmem:[#allocation2 + $0x1c] sm:$0xf]
        %v414 = vld [vmem:[#allocation2 + $0x20] sm:$0xf]
        %v415 = vld [vmem:[#allocation2 + $0x24] sm:$0xf]
        %v416 = vld [vmem:[#allocation2 + $0x28] sm:$0xf]
        %v417 = vld [vmem:[#allocation2 + $0x2c] sm:$0xf]
        %v418 = vld [vmem:[#allocation2 + $0x30] sm:$0xf]
        %v419 = vld [vmem:[#allocation2 + $0x34] sm:$0xf]
        %v420 = vld [vmem:[#allocation2 + $0x38] sm:$0xf]
        %v421 = vld [vmem:[#allocation2 + $0x3c] sm:$0xf]
        %v422 = vld [vmem:[#allocation2 + $0x40] sm:$0xf]
        %v423 = vld [vmem:[#allocation2 + $0x44] sm:$0x3]
        %v424 = vld [vmem:[#allocation2 + $0x4] sm:$0x8]
        %v425 = vld [vmem:[#allocation2 + $0x44] sm:$0x7]
        %v426 = vld [vmem:[#allocation2 + $0x44] sm:$0xf]
        %v444 = vunpack.c.l.b16 %v407
        %v445 = vunpack.c.l.b16 %v408
        %v446 = vunpack.c.l.b16 %v409
        %v447 = vunpack.c.l.b16 %v410
        %v448 = vunpack.c.l.b16 %v411
        %v449 = vunpack.c.l.b16 %v412
        %v450 = vunpack.c.l.b16 %v413
        %v451 = vunpack.c.l.b16 %v414
        %v452 = vunpack.c.l.b16 %v415
        %v453 = vunpack.c.l.b16 %v416
        %v454 = vunpack.c.l.b16 %v417
        %v455 = vunpack.c.l.b16 %v418
        %v456 = vunpack.c.l.b16 %v419
        %v457 = vunpack.c.l.b16 %v420
        %v458 = vunpack.c.l.b16 %v421
        %v459 = vunpack.c.l.b16 %v422
        %v460 = vunpack.c.l.b16 %v423
        %v461 = vpack.c.b16 %v445, %v444
        %v462 = vpack.c.b16 %v447, %v446
        %v463 = vpack.c.b16 %v449, %v448
        %v464 = vpack.c.b16 %v451, %v450
        %v465 = vpack.c.b16 %v453, %v452
        %v466 = vpack.c.b16 %v455, %v454
        %v467 = vpack.c.b16 %v457, %v456
        %v468 = vpack.c.b16 %v459, %v458
        %v469 = vpack.c.b16 %v460, %v460
        %v472 = vunpack.c.l.b16 %v424
        %v473 = vunpack.c.l.b16 %v425
        %v474 = vpack.c.b16 %v445, %v472
        %v475 = vpack.c.b16 %v473, %v473
        %vm476 = vcmask 1046528
        %v477 = vrot.slane %v474, 1
        %v478 = vrot.slane %v462, 1
        %v479 = vsel %vm476, %v477, %v478
        %v480 = vrot.slane %v463, 1
        %v481 = vsel %vm476, %v478, %v480
        %v482 = vrot.slane %v464, 1
        %v483 = vsel %vm476, %v480, %v482
        %v484 = vrot.slane %v465, 1
        %v485 = vsel %vm476, %v482, %v484
        %v486 = vrot.slane %v466, 1
        %v487 = vsel %vm476, %v484, %v486
        %v488 = vrot.slane %v467, 1
        %v489 = vsel %vm476, %v486, %v488
        %v490 = vrot.slane %v468, 1
        %v491 = vsel %vm476, %v488, %v490
        %v492 = vrot.slane %v475, 1
        %v493 = vsel %vm476, %v490, %v492
        %v495 = vunpack.c.l.b16 %v426
        %v496 = vpack.c.b16 %v446, %v445
        %v497 = vpack.c.b16 %v448, %v447
        %v498 = vpack.c.b16 %v450, %v449
        %v499 = vpack.c.b16 %v452, %v451
        %v500 = vpack.c.b16 %v454, %v453
        %v501 = vpack.c.b16 %v456, %v455
        %v502 = vpack.c.b16 %v458, %v457
        %v503 = vpack.c.b16 %v495, %v459
        %vm504 = vcmask 1041408
        %v505 = vrot.slane %v496, 6
        %v506 = vrot.slane %v497, 6
        %v507 = vsel %vm504, %v505, %v506
        %v508 = vrot.slane %v498, 6
        %v509 = vsel %vm504, %v506, %v508
        %v510 = vrot.slane %v499, 6
        %v511 = vsel %vm504, %v508, %v510
        %v512 = vrot.slane %v500, 6
        %v513 = vsel %vm504, %v510, %v512
        %v514 = vrot.slane %v501, 6
        %v515 = vsel %vm504, %v512, %v514
        %v516 = vrot.slane %v502, 6
        %v517 = vsel %vm504, %v514, %v516
        %v518 = vrot.slane %v503, 6
        %v519 = vsel %vm504, %v516, %v518
        %v520 = vld [vmem:[#allocation7] sm:$0xf]
        %v521 = vld [vmem:[#allocation7 + $0x4] sm:$0xf]
        %v522 = vld [vmem:[#allocation7 + $0x8] sm:$0xf]
        %v523 = vld [vmem:[#allocation7 + $0xc] sm:$0xf]
        %v524 = vld [vmem:[#allocation7 + $0x10] sm:$0xf]
        %v525 = vld [vmem:[#allocation7 + $0x14] sm:$0xf]
        %v526 = vld [vmem:[#allocation7 + $0x18] sm:$0xf]
        %v527 = vld [vmem:[#allocation7 + $0x1c] sm:$0xf]
        %v528 = vld [vmem:[#allocation7 + $0x20] sm:$0xf]
        %v529 = vld [vmem:[#allocation7 + $0x24] sm:$0xf]
        %v530 = vld [vmem:[#allocation7 + $0x28] sm:$0xf]
        %v531 = vld [vmem:[#allocation7 + $0x2c] sm:$0xf]
        %v532 = vld [vmem:[#allocation7 + $0x30] sm:$0xf]
        %v533 = vld [vmem:[#allocation7 + $0x34] sm:$0xf]
        %v534 = vld [vmem:[#allocation7 + $0x38] sm:$0xf]
        %v535 = vld [vmem:[#allocation7 + $0x3c] sm:$0xf]
        %v536 = vld [vmem:[#allocation7 + $0x40] sm:$0xf]
        %v537 = vld [vmem:[#allocation7 + $0x44] sm:$0xf]
        %v538 = vld [vmem:[#allocation7 + $0x48] sm:$0xf]
        %v539 = vld [vmem:[#allocation7 + $0x4c] sm:$0xf]
        %v540 = vld [vmem:[#allocation7 + $0x50] sm:$0xf]
        %v541 = vld [vmem:[#allocation7 + $0x54] sm:$0xf]
        %v542 = vld [vmem:[#allocation7 + $0x58] sm:$0xf]
        %v543 = vld [vmem:[#allocation7 + $0x5c] sm:$0xf]
        %v544 = vld [vmem:[#allocation7 + $0x60] sm:$0xf]
        %v545 = vld [vmem:[#allocation7 + $0x64] sm:$0xf]
        %v546 = vld [vmem:[#allocation7 + $0x68] sm:$0xf]
        %v547 = vld [vmem:[#allocation7 + $0x6c] sm:$0xf]
        %v548 = vld [vmem:[#allocation7 + $0x70] sm:$0xf]
        %v549 = vld [vmem:[#allocation7 + $0x74] sm:$0xf]
        %v550 = vld [vmem:[#allocation7 + $0x78] sm:$0xf]
        %v551 = vld [vmem:[#allocation7 + $0x7c] sm:$0xf]
        %v552 = vld [vmem:[#allocation7 + $0x80] sm:$0xf]
        %v553 = vld [vmem:[#allocation7 + $0x84] sm:$0xf]
        %v554 = vld [vmem:[#allocation7 + $0x88] sm:$0xf]
        %v555 = vld [vmem:[#allocation7 + $0x8c] sm:$0xf]
        %v556 = vld [vmem:[#allocation7 + $0x90] sm:$0xf]
        %v557 = vld [vmem:[#allocation7 + $0x94] sm:$0xf]
        %v558 = vld [vmem:[#allocation7 + $0x98] sm:$0xf]
        %v559 = vld [vmem:[#allocation7 + $0x9c] sm:$0xf]
        %v560 = vld [vmem:[#allocation7 + $0xa0] sm:$0xf]
        %v561 = vld [vmem:[#allocation7 + $0xa4] sm:$0xf]
        %v562 = vld [vmem:[#allocation7 + $0xa8] sm:$0xf]
        %v563 = vld [vmem:[#allocation7 + $0xac] sm:$0xf]
        %v564 = vld [vmem:[#allocation7 + $0xb0] sm:$0xf]
        %v565 = vld [vmem:[#allocation7 + $0xb4] sm:$0xf]
        %v566 = vld [vmem:[#allocation7 + $0xb8] sm:$0xf]
        %v567 = vld [vmem:[#allocation7 + $0xbc] sm:$0xf]
        %v568 = vld [vmem:[%s2] sm:$0x1]
        %v570 = vlaneseq
        %v571 = vshrl.u32 %v570, 7
        %v572 = vsub.s32 0, %v571
        %v573 = vrot.slane %v568, %v572
        %vm575 = vcmask 1045504
        %v576 = vrot.slane %v461, 2
        %v577 = vrot.slane %v462, 2
        %v578 = vsel %vm575, %v576, %v577
        %v579 = vrot.slane %v479, 2
        %v580 = vrot.slane %v481, 2
        %v581 = vsel %vm575, %v579, %v580
        %v582 = vrot.slane %v505, 2
        %v583 = vrot.slane %v507, 2
        %v584 = vsel %vm575, %v582, %v583
        %v585 = vrot.slane %v463, 2
        %v586 = vsel %vm575, %v577, %v585
        %v587 = vrot.slane %v483, 2
        %v588 = vsel %vm575, %v580, %v587
        %v589 = vrot.slane %v509, 2
        %v590 = vsel %vm575, %v583, %v589
        %v591 = vrot.slane %v464, 2
        %v592 = vsel %vm575, %v585, %v591
        %v593 = vrot.slane %v485, 2
        %v594 = vsel %vm575, %v587, %v593
        %v595 = vrot.slane %v511, 2
        %v596 = vsel %vm575, %v589, %v595
        %v597 = vrot.slane %v465, 2
        %v598 = vsel %vm575, %v591, %v597
        %v599 = vrot.slane %v487, 2
        %v600 = vsel %vm575, %v593, %v599
        %v601 = vrot.slane %v513, 2
        %v602 = vsel %vm575, %v595, %v601
        %v603 = vrot.slane %v466, 2
        %v604 = vsel %vm575, %v597, %v603
        %v605 = vrot.slane %v489, 2
        %v606 = vsel %vm575, %v599, %v605
        %v607 = vrot.slane %v515, 2
        %v608 = vsel %vm575, %v601, %v607
        %v609 = vrot.slane %v467, 2
        %v610 = vsel %vm575, %v603, %v609
        %v611 = vrot.slane %v491, 2
        %v612 = vsel %vm575, %v605, %v611
        %v613 = vrot.slane %v517, 2
        %v614 = vsel %vm575, %v607, %v613
        %v615 = vrot.slane %v468, 2
        %v616 = vsel %vm575, %v609, %v615
        %v617 = vrot.slane %v493, 2
        %v618 = vsel %vm575, %v611, %v617
        %v619 = vrot.slane %v519, 2
        %v620 = vsel %vm575, %v613, %v619
        %v621 = vrot.slane %v469, 2
        %v622 = vsel %vm575, %v615, %v621
        %v623 = vrot.slane %v492, 2
        %v624 = vsel %vm575, %v617, %v623
        %v625 = vrot.slane %v518, 2
        %v626 = vsel %vm575, %v619, %v625
        %v699 = vunpack.c.l.b16 %v520
        %v700 = vunpack.c.l.b16 %v521
        %v701 = vunpack.c.l.b16 %v522
        %v702 = vunpack.c.l.b16 %v523
        %v703 = vunpack.c.l.b16 %v524
        %v704 = vunpack.c.l.b16 %v525
        %v705 = vunpack.c.l.b16 %v526
        %v706 = vunpack.c.l.b16 %v527
        %v707 = vunpack.c.l.b16 %v528
        %v708 = vunpack.c.l.b16 %v529
        %v709 = vunpack.c.l.b16 %v530
        %v710 = vunpack.c.l.b16 %v531
        %v711 = vunpack.c.l.b16 %v532
        %v712 = vunpack.c.l.b16 %v533
        %v713 = vunpack.c.l.b16 %v534
        %v714 = vunpack.c.l.b16 %v535
        %v715 = vunpack.c.l.b16 %v536
        %v716 = vunpack.c.l.b16 %v537
        %v717 = vunpack.c.l.b16 %v538
        %v718 = vunpack.c.l.b16 %v539
        %v719 = vunpack.c.l.b16 %v540
        %v720 = vunpack.c.l.b16 %v541
        %v721 = vunpack.c.l.b16 %v542
        %v722 = vunpack.c.l.b16 %v543
        %v723 = vunpack.c.l.b16 %v544
        %v724 = vunpack.c.l.b16 %v545
        %v725 = vunpack.c.l.b16 %v546
        %v726 = vunpack.c.l.b16 %v547
        %v727 = vunpack.c.l.b16 %v548
        %v728 = vunpack.c.l.b16 %v549
        %v729 = vunpack.c.l.b16 %v550
        %v730 = vunpack.c.l.b16 %v551
        %v731 = vunpack.c.l.b16 %v552
        %v732 = vunpack.c.l.b16 %v553
        %v733 = vunpack.c.l.b16 %v554
        %v734 = vunpack.c.l.b16 %v555
        %v735 = vunpack.c.l.b16 %v556
        %v736 = vunpack.c.l.b16 %v557
        %v737 = vunpack.c.l.b16 %v558
        %v738 = vunpack.c.l.b16 %v559
        %v739 = vunpack.c.l.b16 %v560
        %v740 = vunpack.c.l.b16 %v561
        %v741 = vunpack.c.l.b16 %v562
        %v742 = vunpack.c.l.b16 %v563
        %v743 = vunpack.c.l.b16 %v564
        %v744 = vunpack.c.l.b16 %v565
        %v745 = vunpack.c.l.b16 %v566
        %v746 = vunpack.c.l.b16 %v567
        %v747 = vpack.c.b16 %v700, %v699
        %v748 = vpack.c.b16 %v702, %v701
        %v749 = vpack.c.b16 %v704, %v703
        %v750 = vpack.c.b16 %v706, %v705
        %v751 = vpack.c.b16 %v708, %v707
        %v752 = vpack.c.b16 %v710, %v709
        %v753 = vpack.c.b16 %v712, %v711
        %v754 = vpack.c.b16 %v714, %v713
        %v755 = vpack.c.b16 %v716, %v715
        %v756 = vpack.c.b16 %v718, %v717
        %v757 = vpack.c.b16 %v720, %v719
        %v758 = vpack.c.b16 %v722, %v721
        %v759 = vpack.c.b16 %v724, %v723
        %v760 = vpack.c.b16 %v726, %v725
        %v761 = vpack.c.b16 %v728, %v727
        %v762 = vpack.c.b16 %v730, %v729
        %v763 = vpack.c.b16 %v732, %v731
        %v764 = vpack.c.b16 %v734, %v733
        %v765 = vpack.c.b16 %v736, %v735
        %v766 = vpack.c.b16 %v738, %v737
        %v767 = vpack.c.b16 %v740, %v739
        %v768 = vpack.c.b16 %v742, %v741
        %v769 = vpack.c.b16 %v744, %v743
        %v770 = vpack.c.b16 %v746, %v745
        %795 = vmatprep.subr.bf16.mxu0 0
        %796 = vmatpush1.bf16.msra.mxu0 %v754
        %797 = vmatprep.subr.bf16.mxu0 0
        %798 = vmatpush1.bf16.msra.mxu0 %v753
        %799 = vmatprep.subr.bf16.mxu0 0
        %800 = vmatpush1.bf16.msra.mxu0 %v752
        %801 = vmatprep.subr.bf16.mxu0 0
        %802 = vmatpush1.bf16.msra.mxu0 %v751
        %803 = vmatprep.subr.bf16.mxu0 0
        %804 = vmatpush1.bf16.msra.mxu0 %v750
        %805 = vmatprep.subr.bf16.mxu0 0
        %806 = vmatpush1.bf16.msra.mxu0 %v749
        %807 = vmatprep.subr.bf16.mxu0 0
        %808 = vmatpush1.bf16.msra.mxu0 %v748
        %809 = vmatprep.subr.bf16.mxu0 0
        %810 = vmatpush1.bf16.msra.mxu0 %v747
        %811 = vmatprep.subr.bf16.mxu0 0
        %812 = vmatpush2.bf16.msra.mxu0 %v762
        %813 = vmatprep.subr.bf16.mxu0 0
        %814 = vmatpush2.bf16.msra.mxu0 %v761
        %815 = vmatprep.subr.bf16.mxu0 0
        %816 = vmatpush2.bf16.msra.mxu0 %v760
        %817 = vmatprep.subr.bf16.mxu0 0
        %818 = vmatpush2.bf16.msra.mxu0 %v759
        %819 = vmatprep.subr.bf16.mxu0 0
        %820 = vmatpush2.bf16.msra.mxu0 %v758
        %821 = vmatprep.subr.bf16.mxu0 0
        %822 = vmatpush2.bf16.msra.mxu0 %v757
        %823 = vmatprep.subr.bf16.mxu0 0
        %824 = vmatpush2.bf16.msra.mxu0 %v756
        %825 = vmatprep.subr.bf16.mxu0 0
        %826 = vmatpush2.bf16.msra.mxu0 %v755
        %827 = vmatprep.mubr.bf16.mxu0 %v581
        %828 = vmatmul.mubr.bf16.gmra.mxu0 %v578
        %v829 = vpop.f32.mrf.mxu0
        %v830 = vadd.f32 %v573, %v829
        %v831 = vpop.f32.mrf.mxu0
        %v832 = vpop.f32.mrf.mxu0
        %v833 = vadd.f32 %v573, %v832
        %v834 = vpop.f32.mrf.mxu0
        %835 = vmatprep.mubr.bf16.mxu0 %v588
        %836 = vmatmul.mubr.bf16.gmra.mxu0 %v586
        %v837 = vpop.f32.mrf.mxu0
        %v838 = vadd.f32 %v573, %v837
        %v839 = vpop.f32.mrf.mxu0
        %v840 = vpop.f32.mrf.mxu0
        %v841 = vadd.f32 %v573, %v840
        %v842 = vpop.f32.mrf.mxu0
        %843 = vmatprep.mubr.bf16.mxu0 %v594
        %844 = vmatmul.mubr.bf16.gmra.mxu0 %v592
        %v845 = vpop.f32.mrf.mxu0
        %v846 = vadd.f32 %v573, %v845
        %v847 = vpop.f32.mrf.mxu0
        %v848 = vpop.f32.mrf.mxu0
        %v849 = vadd.f32 %v573, %v848
        %v850 = vpop.f32.mrf.mxu0
        %851 = vmatprep.mubr.bf16.mxu0 %v600
        %852 = vmatmul.mubr.bf16.gmra.mxu0 %v598
        %v853 = vpop.f32.mrf.mxu0
        %v854 = vadd.f32 %v573, %v853
        %v855 = vpop.f32.mrf.mxu0
        %v856 = vpop.f32.mrf.mxu0
        %v857 = vadd.f32 %v573, %v856
        %v858 = vpop.f32.mrf.mxu0
        %859 = vmatprep.mubr.bf16.mxu0 %v606
        %860 = vmatmul.mubr.bf16.gmra.mxu0 %v604
        %v861 = vpop.f32.mrf.mxu0
        %v862 = vadd.f32 %v573, %v861
        %v863 = vpop.f32.mrf.mxu0
        %v864 = vpop.f32.mrf.mxu0
        %v865 = vadd.f32 %v573, %v864
        %v866 = vpop.f32.mrf.mxu0
        %867 = vmatprep.mubr.bf16.mxu0 %v612
        %868 = vmatmul.mubr.bf16.gmra.mxu0 %v610
        %v869 = vpop.f32.mrf.mxu0
        %v870 = vadd.f32 %v573, %v869
        %v871 = vpop.f32.mrf.mxu0
        %v872 = vpop.f32.mrf.mxu0
        %v873 = vadd.f32 %v573, %v872
        %v874 = vpop.f32.mrf.mxu0
        %875 = vmatprep.mubr.bf16.mxu0 %v618
        %876 = vmatmul.mubr.bf16.gmra.mxu0 %v616
        %v877 = vpop.f32.mrf.mxu0
        %v878 = vadd.f32 %v573, %v877
        %v879 = vpop.f32.mrf.mxu0
        %v880 = vpop.f32.mrf.mxu0
        %v881 = vadd.f32 %v573, %v880
        %v882 = vpop.f32.mrf.mxu0
        %883 = vmatprep.mubr.bf16.mxu0 %v624
        %884 = vmatmul.mubr.bf16.gmra.mxu0 %v622
        %v885 = vpop.f32.mrf.mxu0
        %v886 = vadd.f32 %v573, %v885
        %v887 = vpop.f32.mrf.mxu0
        %v888 = vpop.f32.mrf.mxu0
        %v889 = vadd.f32 %v573, %v888
        %v890 = vpop.f32.mrf.mxu0
        %891 = vdwg.mxu0
        %892 = vmatprep.subr.bf16.mxu0 0
        %893 = vmatpush1.bf16.msra.mxu0 %v770
        %894 = vmatprep.subr.bf16.mxu0 0
        %895 = vmatpush1.bf16.msra.mxu0 %v769
        %896 = vmatprep.subr.bf16.mxu0 0
        %897 = vmatpush1.bf16.msra.mxu0 %v768
        %898 = vmatprep.subr.bf16.mxu0 0
        %899 = vmatpush1.bf16.msra.mxu0 %v767
        %900 = vmatprep.subr.bf16.mxu0 0
        %901 = vmatpush1.bf16.msra.mxu0 %v766
        %902 = vmatprep.subr.bf16.mxu0 0
        %903 = vmatpush1.bf16.msra.mxu0 %v765
        %904 = vmatprep.subr.bf16.mxu0 0
        %905 = vmatpush1.bf16.msra.mxu0 %v764
        %906 = vmatprep.subr.bf16.mxu0 0
        %907 = vmatpush1.bf16.msra.mxu0 %v763
        %908 = vmatprep.subr.bf16.mxu0 0
        %909 = vmatpush2.bf16.msra.mxu0 0
        %910 = vmatprep.subr.bf16.mxu0 0
        %911 = vmatpush2.bf16.msra.mxu0 0
        %912 = vmatprep.subr.bf16.mxu0 0
        %913 = vmatpush2.bf16.msra.mxu0 0
        %914 = vmatprep.subr.bf16.mxu0 0
        %915 = vmatpush2.bf16.msra.mxu0 0
        %916 = vmatprep.subr.bf16.mxu0 0
        %917 = vmatpush2.bf16.msra.mxu0 0
        %918 = vmatprep.subr.bf16.mxu0 0
        %919 = vmatpush2.bf16.msra.mxu0 0
        %920 = vmatprep.subr.bf16.mxu0 0
        %921 = vmatpush2.bf16.msra.mxu0 0
        %922 = vmatprep.subr.bf16.mxu0 0
        %923 = vmatpush2.bf16.msra.mxu0 0
        %924 = vmatprep.mubr.bf16.mxu0 0
        %925 = vmatmul.mubr.bf16.gmra.mxu0 %v584
        %v926 = vpop.f32.mrf.mxu0
        %v927 = vadd.f32 %v830, %v926
        %v928 = vpop.f32.mrf.mxu0
        %v929 = vpop.f32.mrf.mxu0
        %v930 = vadd.f32 %v833, %v929
        %v931 = vpop.f32.mrf.mxu0
        %932 = vmatprep.mubr.bf16.mxu0 0
        %933 = vmatmul.mubr.bf16.gmra.mxu0 %v590
        %v934 = vpop.f32.mrf.mxu0
        %v935 = vadd.f32 %v838, %v934
        %v936 = vpop.f32.mrf.mxu0
        %v937 = vpop.f32.mrf.mxu0
        %v938 = vadd.f32 %v841, %v937
        %v939 = vpop.f32.mrf.mxu0
        %940 = vmatprep.mubr.bf16.mxu0 0
        %941 = vmatmul.mubr.bf16.gmra.mxu0 %v596
        %v942 = vpop.f32.mrf.mxu0
        %v943 = vadd.f32 %v846, %v942
        %v944 = vpop.f32.mrf.mxu0
        %v945 = vpop.f32.mrf.mxu0
        %v946 = vadd.f32 %v849, %v945
        %v947 = vpop.f32.mrf.mxu0
        %948 = vmatprep.mubr.bf16.mxu0 0
        %949 = vmatmul.mubr.bf16.gmra.mxu0 %v602
        %v950 = vpop.f32.mrf.mxu0
        %v951 = vadd.f32 %v854, %v950
        %v952 = vpop.f32.mrf.mxu0
        %v953 = vpop.f32.mrf.mxu0
        %v954 = vadd.f32 %v857, %v953
        %v955 = vpop.f32.mrf.mxu0
        %956 = vmatprep.mubr.bf16.mxu0 0
        %957 = vmatmul.mubr.bf16.gmra.mxu0 %v608
        %v958 = vpop.f32.mrf.mxu0
        %v959 = vadd.f32 %v862, %v958
        %v960 = vpop.f32.mrf.mxu0
        %v961 = vpop.f32.mrf.mxu0
        %v962 = vadd.f32 %v865, %v961
        %v963 = vpop.f32.mrf.mxu0
        %964 = vmatprep.mubr.bf16.mxu0 0
        %965 = vmatmul.mubr.bf16.gmra.mxu0 %v614
        %v966 = vpop.f32.mrf.mxu0
        %v967 = vadd.f32 %v870, %v966
        %v968 = vpop.f32.mrf.mxu0
        %v969 = vpop.f32.mrf.mxu0
        %v970 = vadd.f32 %v873, %v969
        %v971 = vpop.f32.mrf.mxu0
        %972 = vmatprep.mubr.bf16.mxu0 0
        %973 = vmatmul.mubr.bf16.gmra.mxu0 %v620
        %v974 = vpop.f32.mrf.mxu0
        %v975 = vadd.f32 %v878, %v974
        %v976 = vpop.f32.mrf.mxu0
        %v977 = vpop.f32.mrf.mxu0
        %v978 = vadd.f32 %v881, %v977
        %v979 = vpop.f32.mrf.mxu0
        %980 = vmatprep.mubr.bf16.mxu0 0
        %981 = vmatmul.mubr.bf16.gmra.mxu0 %v626
        %v982 = vpop.f32.mrf.mxu0
        %v983 = vadd.f32 %v886, %v982
        %v984 = vpop.f32.mrf.mxu0
        %v985 = vpop.f32.mrf.mxu0
        %v986 = vadd.f32 %v889, %v985
        %v987 = vpop.f32.mrf.mxu0
        %988 = vdwg.mxu0
        %v989 = vmax.f32 %v927, 0.0
        %v990 = vmax.f32 %v930, 0.0
        %v991 = vmax.f32 %v935, 0.0
        %v992 = vmax.f32 %v938, 0.0
        %v993 = vmax.f32 %v943, 0.0
        %v994 = vmax.f32 %v946, 0.0
        %v995 = vmax.f32 %v951, 0.0
        %v996 = vmax.f32 %v954, 0.0
        %v997 = vmax.f32 %v959, 0.0
        %v998 = vmax.f32 %v962, 0.0
        %v999 = vmax.f32 %v967, 0.0
        %v1000 = vmax.f32 %v970, 0.0
        %v1001 = vmax.f32 %v975, 0.0
        %v1002 = vmax.f32 %v978, 0.0
        %v1003 = vmax.f32 %v983, 0.0
        %v1004 = vmax.f32 %v986, 0.0
        %v1005 = vld [vmem:[#allocation2 + $0x44] sm:$0xc]
        %1006 = vst [vmem:[#allocation2 + $0x4] sm:$0xc] %v1005
        %v1007 = vpack.c.bf16 %v990, %v989
        %v1008 = vpack.c.bf16 %v992, %v991
        %v1009 = vpack.c.bf16 %v994, %v993
        %v1010 = vpack.c.bf16 %v996, %v995
        %v1011 = vpack.c.bf16 %v998, %v997
        %v1012 = vpack.c.bf16 %v1000, %v999
        %v1013 = vpack.c.bf16 %v1002, %v1001
        %v1014 = vpack.c.bf16 %v1004, %v1003
        %v1023 = vunpack.c.l.b16 %v1007
        %v1024 = vunpack.c.h.b16 %v1007
        %v1025 = vunpack.c.l.b16 %v1008
        %v1026 = vunpack.c.h.b16 %v1008
        %v1027 = vunpack.c.l.b16 %v1009
        %v1028 = vunpack.c.h.b16 %v1009
        %v1029 = vunpack.c.l.b16 %v1010
        %v1030 = vunpack.c.h.b16 %v1010
        %v1031 = vunpack.c.l.b16 %v1011
        %v1032 = vunpack.c.h.b16 %v1011
        %v1033 = vunpack.c.l.b16 %v1012
        %v1034 = vunpack.c.h.b16 %v1012
        %v1035 = vunpack.c.l.b16 %v1013
        %v1036 = vunpack.c.h.b16 %v1013
        %v1037 = vunpack.c.l.b16 %v1014
        %v1038 = vunpack.c.h.b16 %v1014
        %v1039 = vpack.c.b16 %v1023, %v1023
        %v1040 = vpack.c.b16 %v1024, %v1024
        %v1041 = vpack.c.b16 %v1025, %v1025
        %v1042 = vpack.c.b16 %v1026, %v1026
        %v1043 = vpack.c.b16 %v1027, %v1027
        %v1044 = vpack.c.b16 %v1028, %v1028
        %v1045 = vpack.c.b16 %v1029, %v1029
        %v1046 = vpack.c.b16 %v1030, %v1030
        %v1047 = vpack.c.b16 %v1031, %v1031
        %v1048 = vpack.c.b16 %v1032, %v1032
        %v1049 = vpack.c.b16 %v1033, %v1033
        %v1050 = vpack.c.b16 %v1034, %v1034
        %v1051 = vpack.c.b16 %v1035, %v1035
        %v1052 = vpack.c.b16 %v1036, %v1036
        %v1053 = vpack.c.b16 %v1037, %v1037
        %v1054 = vpack.c.b16 %v1038, %v1038
        %1071 = vst [vmem:[#allocation3 + $0x8] sm:$0xf] %v1039
        %1072 = vst [vmem:[#allocation3 + $0xc] sm:$0xf] %v1040
        %1073 = vst [vmem:[#allocation3 + $0x10] sm:$0xf] %v1041
        %1074 = vst [vmem:[#allocation3 + $0x14] sm:$0xf] %v1042
        %1075 = vst [vmem:[#allocation3 + $0x18] sm:$0xf] %v1043
        %1076 = vst [vmem:[#allocation3 + $0x1c] sm:$0xf] %v1044
        %1077 = vst [vmem:[#allocation3 + $0x20] sm:$0xf] %v1045
        %1078 = vst [vmem:[#allocation3 + $0x24] sm:$0xf] %v1046
        %1079 = vst [vmem:[#allocation3 + $0x28] sm:$0xf] %v1047
        %1080 = vst [vmem:[#allocation3 + $0x2c] sm:$0xf] %v1048
        %1081 = vst [vmem:[#allocation3 + $0x30] sm:$0xf] %v1049
        %1082 = vst [vmem:[#allocation3 + $0x34] sm:$0xf] %v1050
        %1083 = vst [vmem:[#allocation3 + $0x38] sm:$0xf] %v1051
        %1084 = vst [vmem:[#allocation3 + $0x3c] sm:$0xf] %v1052
        %1085 = vst [vmem:[#allocation3 + $0x40] sm:$0xf] %v1053
        %1086 = vst [vmem:[#allocation3 + $0x44] sm:$0xf] %v1054
        %v1087 = vld [vmem:[#allocation3 + $0x4] sm:$0xc]
        %v1088 = vld [vmem:[#allocation3 + $0x8] sm:$0xf]
        %v1089 = vld [vmem:[#allocation3 + $0xc] sm:$0xf]
        %v1090 = vld [vmem:[#allocation3 + $0x10] sm:$0xf]
        %v1091 = vld [vmem:[#allocation3 + $0x14] sm:$0xf]
        %v1092 = vld [vmem:[#allocation3 + $0x18] sm:$0xf]
        %v1093 = vld [vmem:[#allocation3 + $0x1c] sm:$0xf]
        %v1094 = vld [vmem:[#allocation3 + $0x20] sm:$0xf]
        %v1095 = vld [vmem:[#allocation3 + $0x24] sm:$0xf]
        %v1096 = vld [vmem:[#allocation3 + $0x28] sm:$0xf]
        %v1097 = vld [vmem:[#allocation3 + $0x2c] sm:$0xf]
        %v1098 = vld [vmem:[#allocation3 + $0x30] sm:$0xf]
        %v1099 = vld [vmem:[#allocation3 + $0x34] sm:$0xf]
        %v1100 = vld [vmem:[#allocation3 + $0x38] sm:$0xf]
        %v1101 = vld [vmem:[#allocation3 + $0x3c] sm:$0xf]
        %v1102 = vld [vmem:[#allocation3 + $0x40] sm:$0xf]
        %v1103 = vld [vmem:[#allocation3 + $0x44] sm:$0x3]
        %v1104 = vld [vmem:[#allocation3 + $0x4] sm:$0x8]
        %v1105 = vld [vmem:[#allocation3 + $0x44] sm:$0x7]
        %v1106 = vld [vmem:[#allocation3 + $0x44] sm:$0xf]
        %v1124 = vunpack.c.l.b16 %v1087
        %v1125 = vunpack.c.l.b16 %v1088
        %v1126 = vunpack.c.l.b16 %v1089
        %v1127 = vunpack.c.l.b16 %v1090
        %v1128 = vunpack.c.l.b16 %v1091
        %v1129 = vunpack.c.l.b16 %v1092
        %v1130 = vunpack.c.l.b16 %v1093
        %v1131 = vunpack.c.l.b16 %v1094
        %v1132 = vunpack.c.l.b16 %v1095
        %v1133 = vunpack.c.l.b16 %v1096
        %v1134 = vunpack.c.l.b16 %v1097
        %v1135 = vunpack.c.l.b16 %v1098
        %v1136 = vunpack.c.l.b16 %v1099
        %v1137 = vunpack.c.l.b16 %v1100
        %v1138 = vunpack.c.l.b16 %v1101
        %v1139 = vunpack.c.l.b16 %v1102
        %v1140 = vunpack.c.l.b16 %v1103
        %v1141 = vpack.c.b16 %v1125, %v1124
        %v1142 = vpack.c.b16 %v1127, %v1126
        %v1143 = vpack.c.b16 %v1129, %v1128
        %v1144 = vpack.c.b16 %v1131, %v1130
        %v1145 = vpack.c.b16 %v1133, %v1132
        %v1146 = vpack.c.b16 %v1135, %v1134
        %v1147 = vpack.c.b16 %v1137, %v1136
        %v1148 = vpack.c.b16 %v1139, %v1138
        %v1149 = vpack.c.b16 %v1140, %v1140
        %v1152 = vunpack.c.l.b16 %v1104
        %v1153 = vunpack.c.l.b16 %v1105
        %v1154 = vpack.c.b16 %v1125, %v1152
        %v1155 = vpack.c.b16 %v1153, %v1153
        %v1156 = vrot.slane %v1154, 1
        %v1157 = vrot.slane %v1142, 1
        %v1158 = vsel %vm476, %v1156, %v1157
        %v1159 = vrot.slane %v1143, 1
        %v1160 = vsel %vm476, %v1157, %v1159
        %v1161 = vrot.slane %v1144, 1
        %v1162 = vsel %vm476, %v1159, %v1161
        %v1163 = vrot.slane %v1145, 1
        %v1164 = vsel %vm476, %v1161, %v1163
        %v1165 = vrot.slane %v1146, 1
        %v1166 = vsel %vm476, %v1163, %v1165
        %v1167 = vrot.slane %v1147, 1
        %v1168 = vsel %vm476, %v1165, %v1167
        %v1169 = vrot.slane %v1148, 1
        %v1170 = vsel %vm476, %v1167, %v1169
        %v1171 = vrot.slane %v1155, 1
        %v1172 = vsel %vm476, %v1169, %v1171
        %v1174 = vunpack.c.l.b16 %v1106
        %v1175 = vpack.c.b16 %v1126, %v1125
        %v1176 = vpack.c.b16 %v1128, %v1127
        %v1177 = vpack.c.b16 %v1130, %v1129
        %v1178 = vpack.c.b16 %v1132, %v1131
        %v1179 = vpack.c.b16 %v1134, %v1133
        %v1180 = vpack.c.b16 %v1136, %v1135
        %v1181 = vpack.c.b16 %v1138, %v1137
        %v1182 = vpack.c.b16 %v1174, %v1139
        %v1183 = vrot.slane %v1175, 6
        %v1184 = vrot.slane %v1176, 6
        %v1185 = vsel %vm504, %v1183, %v1184
        %v1186 = vrot.slane %v1177, 6
        %v1187 = vsel %vm504, %v1184, %v1186
        %v1188 = vrot.slane %v1178, 6
        %v1189 = vsel %vm504, %v1186, %v1188
        %v1190 = vrot.slane %v1179, 6
        %v1191 = vsel %vm504, %v1188, %v1190
        %v1192 = vrot.slane %v1180, 6
        %v1193 = vsel %vm504, %v1190, %v1192
        %v1194 = vrot.slane %v1181, 6
        %v1195 = vsel %vm504, %v1192, %v1194
        %v1196 = vrot.slane %v1182, 6
        %v1197 = vsel %vm504, %v1194, %v1196
        %v1198 = vld [vmem:[#allocation9] sm:$0xf]
        %v1199 = vld [vmem:[#allocation9 + $0x4] sm:$0xf]
        %v1200 = vld [vmem:[#allocation9 + $0x8] sm:$0xf]
        %v1201 = vld [vmem:[#allocation9 + $0xc] sm:$0xf]
        %v1202 = vld [vmem:[#allocation9 + $0x10] sm:$0xf]
        %v1203 = vld [vmem:[#allocation9 + $0x14] sm:$0xf]
        %v1204 = vld [vmem:[#allocation9 + $0x18] sm:$0xf]
        %v1205 = vld [vmem:[#allocation9 + $0x1c] sm:$0xf]
        %v1206 = vld [vmem:[#allocation9 + $0x20] sm:$0xf]
        %v1207 = vld [vmem:[#allocation9 + $0x24] sm:$0xf]
        %v1208 = vld [vmem:[#allocation9 + $0x28] sm:$0xf]
        %v1209 = vld [vmem:[#allocation9 + $0x2c] sm:$0xf]
        %v1210 = vld [vmem:[#allocation9 + $0x30] sm:$0xf]
        %v1211 = vld [vmem:[#allocation9 + $0x34] sm:$0xf]
        %v1212 = vld [vmem:[#allocation9 + $0x38] sm:$0xf]
        %v1213 = vld [vmem:[#allocation9 + $0x3c] sm:$0xf]
        %v1214 = vld [vmem:[#allocation9 + $0x40] sm:$0xf]
        %v1215 = vld [vmem:[#allocation9 + $0x44] sm:$0xf]
        %v1216 = vld [vmem:[#allocation9 + $0x48] sm:$0xf]
        %v1217 = vld [vmem:[#allocation9 + $0x4c] sm:$0xf]
        %v1218 = vld [vmem:[#allocation9 + $0x50] sm:$0xf]
        %v1219 = vld [vmem:[#allocation9 + $0x54] sm:$0xf]
        %v1220 = vld [vmem:[#allocation9 + $0x58] sm:$0xf]
        %v1221 = vld [vmem:[#allocation9 + $0x5c] sm:$0xf]
        %v1222 = vld [vmem:[#allocation9 + $0x60] sm:$0xf]
        %v1223 = vld [vmem:[#allocation9 + $0x64] sm:$0xf]
        %v1224 = vld [vmem:[#allocation9 + $0x68] sm:$0xf]
        %v1225 = vld [vmem:[#allocation9 + $0x6c] sm:$0xf]
        %v1226 = vld [vmem:[#allocation9 + $0x70] sm:$0xf]
        %v1227 = vld [vmem:[#allocation9 + $0x74] sm:$0xf]
        %v1228 = vld [vmem:[#allocation9 + $0x78] sm:$0xf]
        %v1229 = vld [vmem:[#allocation9 + $0x7c] sm:$0xf]
        %v1230 = vld [vmem:[#allocation9 + $0x80] sm:$0xf]
        %v1231 = vld [vmem:[#allocation9 + $0x84] sm:$0xf]
        %v1232 = vld [vmem:[#allocation9 + $0x88] sm:$0xf]
        %v1233 = vld [vmem:[#allocation9 + $0x8c] sm:$0xf]
        %v1234 = vld [vmem:[#allocation9 + $0x90] sm:$0xf]
        %v1235 = vld [vmem:[#allocation9 + $0x94] sm:$0xf]
        %v1236 = vld [vmem:[#allocation9 + $0x98] sm:$0xf]
        %v1237 = vld [vmem:[#allocation9 + $0x9c] sm:$0xf]
        %v1238 = vld [vmem:[#allocation9 + $0xa0] sm:$0xf]
        %v1239 = vld [vmem:[#allocation9 + $0xa4] sm:$0xf]
        %v1240 = vld [vmem:[#allocation9 + $0xa8] sm:$0xf]
        %v1241 = vld [vmem:[#allocation9 + $0xac] sm:$0xf]
        %v1242 = vld [vmem:[#allocation9 + $0xb0] sm:$0xf]
        %v1243 = vld [vmem:[#allocation9 + $0xb4] sm:$0xf]
        %v1244 = vld [vmem:[#allocation9 + $0xb8] sm:$0xf]
        %v1245 = vld [vmem:[#allocation9 + $0xbc] sm:$0xf]
        %v1246 = vld [vmem:[%s4] sm:$0x1]
        %v1248 = vlaneseq
        %v1249 = vshrl.u32 %v1248, 7
        %v1250 = vsub.s32 0, %v1249
        %v1251 = vrot.slane %v1246, %v1250
        %v1253 = vrot.slane %v1141, 2
        %v1254 = vrot.slane %v1142, 2
        %v1255 = vsel %vm575, %v1253, %v1254
        %v1256 = vrot.slane %v1158, 2
        %v1257 = vrot.slane %v1160, 2
        %v1258 = vsel %vm575, %v1256, %v1257
        %v1259 = vrot.slane %v1183, 2
        %v1260 = vrot.slane %v1185, 2
        %v1261 = vsel %vm575, %v1259, %v1260
        %v1262 = vrot.slane %v1143, 2
        %v1263 = vsel %vm575, %v1254, %v1262
        %v1264 = vrot.slane %v1162, 2
        %v1265 = vsel %vm575, %v1257, %v1264
        %v1266 = vrot.slane %v1187, 2
        %v1267 = vsel %vm575, %v1260, %v1266
        %v1268 = vrot.slane %v1144, 2
        %v1269 = vsel %vm575, %v1262, %v1268
        %v1270 = vrot.slane %v1164, 2
        %v1271 = vsel %vm575, %v1264, %v1270
        %v1272 = vrot.slane %v1189, 2
        %v1273 = vsel %vm575, %v1266, %v1272
        %v1274 = vrot.slane %v1145, 2
        %v1275 = vsel %vm575, %v1268, %v1274
        %v1276 = vrot.slane %v1166, 2
        %v1277 = vsel %vm575, %v1270, %v1276
        %v1278 = vrot.slane %v1191, 2
        %v1279 = vsel %vm575, %v1272, %v1278
        %v1280 = vrot.slane %v1146, 2
        %v1281 = vsel %vm575, %v1274, %v1280
        %v1282 = vrot.slane %v1168, 2
        %v1283 = vsel %vm575, %v1276, %v1282
        %v1284 = vrot.slane %v1193, 2
        %v1285 = vsel %vm575, %v1278, %v1284
        %v1286 = vrot.slane %v1147, 2
        %v1287 = vsel %vm575, %v1280, %v1286
        %v1288 = vrot.slane %v1170, 2
        %v1289 = vsel %vm575, %v1282, %v1288
        %v1290 = vrot.slane %v1195, 2
        %v1291 = vsel %vm575, %v1284, %v1290
        %v1292 = vrot.slane %v1148, 2
        %v1293 = vsel %vm575, %v1286, %v1292
        %v1294 = vrot.slane %v1172, 2
        %v1295 = vsel %vm575, %v1288, %v1294
        %v1296 = vrot.slane %v1197, 2
        %v1297 = vsel %vm575, %v1290, %v1296
        %v1298 = vrot.slane %v1149, 2
        %v1299 = vsel %vm575, %v1292, %v1298
        %v1300 = vrot.slane %v1171, 2
        %v1301 = vsel %vm575, %v1294, %v1300
        %v1302 = vrot.slane %v1196, 2
        %v1303 = vsel %vm575, %v1296, %v1302
        %v1376 = vunpack.c.l.b16 %v1198
        %v1377 = vunpack.c.l.b16 %v1199
        %v1378 = vunpack.c.l.b16 %v1200
        %v1379 = vunpack.c.l.b16 %v1201
        %v1380 = vunpack.c.l.b16 %v1202
        %v1381 = vunpack.c.l.b16 %v1203
        %v1382 = vunpack.c.l.b16 %v1204
        %v1383 = vunpack.c.l.b16 %v1205
        %v1384 = vunpack.c.l.b16 %v1206
        %v1385 = vunpack.c.l.b16 %v1207
        %v1386 = vunpack.c.l.b16 %v1208
        %v1387 = vunpack.c.l.b16 %v1209
        %v1388 = vunpack.c.l.b16 %v1210
        %v1389 = vunpack.c.l.b16 %v1211
        %v1390 = vunpack.c.l.b16 %v1212
        %v1391 = vunpack.c.l.b16 %v1213
        %v1392 = vunpack.c.l.b16 %v1214
        %v1393 = vunpack.c.l.b16 %v1215
        %v1394 = vunpack.c.l.b16 %v1216
        %v1395 = vunpack.c.l.b16 %v1217
        %v1396 = vunpack.c.l.b16 %v1218
        %v1397 = vunpack.c.l.b16 %v1219
        %v1398 = vunpack.c.l.b16 %v1220
        %v1399 = vunpack.c.l.b16 %v1221
        %v1400 = vunpack.c.l.b16 %v1222
        %v1401 = vunpack.c.l.b16 %v1223
        %v1402 = vunpack.c.l.b16 %v1224
        %v1403 = vunpack.c.l.b16 %v1225
        %v1404 = vunpack.c.l.b16 %v1226
        %v1405 = vunpack.c.l.b16 %v1227
        %v1406 = vunpack.c.l.b16 %v1228
        %v1407 = vunpack.c.l.b16 %v1229
        %v1408 = vunpack.c.l.b16 %v1230
        %v1409 = vunpack.c.l.b16 %v1231
        %v1410 = vunpack.c.l.b16 %v1232
        %v1411 = vunpack.c.l.b16 %v1233
        %v1412 = vunpack.c.l.b16 %v1234
        %v1413 = vunpack.c.l.b16 %v1235
        %v1414 = vunpack.c.l.b16 %v1236
        %v1415 = vunpack.c.l.b16 %v1237
        %v1416 = vunpack.c.l.b16 %v1238
        %v1417 = vunpack.c.l.b16 %v1239
        %v1418 = vunpack.c.l.b16 %v1240
        %v1419 = vunpack.c.l.b16 %v1241
        %v1420 = vunpack.c.l.b16 %v1242
        %v1421 = vunpack.c.l.b16 %v1243
        %v1422 = vunpack.c.l.b16 %v1244
        %v1423 = vunpack.c.l.b16 %v1245
        %v1424 = vpack.c.b16 %v1377, %v1376
        %v1425 = vpack.c.b16 %v1379, %v1378
        %v1426 = vpack.c.b16 %v1381, %v1380
        %v1427 = vpack.c.b16 %v1383, %v1382
        %v1428 = vpack.c.b16 %v1385, %v1384
        %v1429 = vpack.c.b16 %v1387, %v1386
        %v1430 = vpack.c.b16 %v1389, %v1388
        %v1431 = vpack.c.b16 %v1391, %v1390
        %v1432 = vpack.c.b16 %v1393, %v1392
        %v1433 = vpack.c.b16 %v1395, %v1394
        %v1434 = vpack.c.b16 %v1397, %v1396
        %v1435 = vpack.c.b16 %v1399, %v1398
        %v1436 = vpack.c.b16 %v1401, %v1400
        %v1437 = vpack.c.b16 %v1403, %v1402
        %v1438 = vpack.c.b16 %v1405, %v1404
        %v1439 = vpack.c.b16 %v1407, %v1406
        %v1440 = vpack.c.b16 %v1409, %v1408
        %v1441 = vpack.c.b16 %v1411, %v1410
        %v1442 = vpack.c.b16 %v1413, %v1412
        %v1443 = vpack.c.b16 %v1415, %v1414
        %v1444 = vpack.c.b16 %v1417, %v1416
        %v1445 = vpack.c.b16 %v1419, %v1418
        %v1446 = vpack.c.b16 %v1421, %v1420
        %v1447 = vpack.c.b16 %v1423, %v1422
        %1472 = vmatprep.subr.bf16.mxu0 0
        %1473 = vmatpush1.bf16.msra.mxu0 %v1431
        %1474 = vmatprep.subr.bf16.mxu0 0
        %1475 = vmatpush1.bf16.msra.mxu0 %v1430
        %1476 = vmatprep.subr.bf16.mxu0 0
        %1477 = vmatpush1.bf16.msra.mxu0 %v1429
        %1478 = vmatprep.subr.bf16.mxu0 0
        %1479 = vmatpush1.bf16.msra.mxu0 %v1428
        %1480 = vmatprep.subr.bf16.mxu0 0
        %1481 = vmatpush1.bf16.msra.mxu0 %v1427
        %1482 = vmatprep.subr.bf16.mxu0 0
        %1483 = vmatpush1.bf16.msra.mxu0 %v1426
        %1484 = vmatprep.subr.bf16.mxu0 0
        %1485 = vmatpush1.bf16.msra.mxu0 %v1425
        %1486 = vmatprep.subr.bf16.mxu0 0
        %1487 = vmatpush1.bf16.msra.mxu0 %v1424
        %1488 = vmatprep.subr.bf16.mxu0 0
        %1489 = vmatpush2.bf16.msra.mxu0 %v1439
        %1490 = vmatprep.subr.bf16.mxu0 0
        %1491 = vmatpush2.bf16.msra.mxu0 %v1438
        %1492 = vmatprep.subr.bf16.mxu0 0
        %1493 = vmatpush2.bf16.msra.mxu0 %v1437
        %1494 = vmatprep.subr.bf16.mxu0 0
        %1495 = vmatpush2.bf16.msra.mxu0 %v1436
        %1496 = vmatprep.subr.bf16.mxu0 0
        %1497 = vmatpush2.bf16.msra.mxu0 %v1435
        %1498 = vmatprep.subr.bf16.mxu0 0
        %1499 = vmatpush2.bf16.msra.mxu0 %v1434
        %1500 = vmatprep.subr.bf16.mxu0 0
        %1501 = vmatpush2.bf16.msra.mxu0 %v1433
        %1502 = vmatprep.subr.bf16.mxu0 0
        %1503 = vmatpush2.bf16.msra.mxu0 %v1432
        %1504 = vmatprep.mubr.bf16.mxu0 %v1258
        %1505 = vmatmul.mubr.bf16.gmra.mxu0 %v1255
        %v1506 = vpop.f32.mrf.mxu0
        %v1507 = vadd.f32 %v1251, %v1506
        %v1508 = vpop.f32.mrf.mxu0
        %v1509 = vpop.f32.mrf.mxu0
        %v1510 = vadd.f32 %v1251, %v1509
        %v1511 = vpop.f32.mrf.mxu0
        %1512 = vmatprep.mubr.bf16.mxu0 %v1265
        %1513 = vmatmul.mubr.bf16.gmra.mxu0 %v1263
        %v1514 = vpop.f32.mrf.mxu0
        %v1515 = vadd.f32 %v1251, %v1514
        %v1516 = vpop.f32.mrf.mxu0
        %v1517 = vpop.f32.mrf.mxu0
        %v1518 = vadd.f32 %v1251, %v1517
        %v1519 = vpop.f32.mrf.mxu0
        %1520 = vmatprep.mubr.bf16.mxu0 %v1271
        %1521 = vmatmul.mubr.bf16.gmra.mxu0 %v1269
        %v1522 = vpop.f32.mrf.mxu0
        %v1523 = vadd.f32 %v1251, %v1522
        %v1524 = vpop.f32.mrf.mxu0
        %v1525 = vpop.f32.mrf.mxu0
        %v1526 = vadd.f32 %v1251, %v1525
        %v1527 = vpop.f32.mrf.mxu0
        %1528 = vmatprep.mubr.bf16.mxu0 %v1277
        %1529 = vmatmul.mubr.bf16.gmra.mxu0 %v1275
        %v1530 = vpop.f32.mrf.mxu0
        %v1531 = vadd.f32 %v1251, %v1530
        %v1532 = vpop.f32.mrf.mxu0
        %v1533 = vpop.f32.mrf.mxu0
        %v1534 = vadd.f32 %v1251, %v1533
        %v1535 = vpop.f32.mrf.mxu0
        %1536 = vmatprep.mubr.bf16.mxu0 %v1283
        %1537 = vmatmul.mubr.bf16.gmra.mxu0 %v1281
        %v1538 = vpop.f32.mrf.mxu0
        %v1539 = vadd.f32 %v1251, %v1538
        %v1540 = vpop.f32.mrf.mxu0
        %v1541 = vpop.f32.mrf.mxu0
        %v1542 = vadd.f32 %v1251, %v1541
        %v1543 = vpop.f32.mrf.mxu0
        %1544 = vmatprep.mubr.bf16.mxu0 %v1289
        %1545 = vmatmul.mubr.bf16.gmra.mxu0 %v1287
        %v1546 = vpop.f32.mrf.mxu0
        %v1547 = vadd.f32 %v1251, %v1546
        %v1548 = vpop.f32.mrf.mxu0
        %v1549 = vpop.f32.mrf.mxu0
        %v1550 = vadd.f32 %v1251, %v1549
        %v1551 = vpop.f32.mrf.mxu0
        %1552 = vmatprep.mubr.bf16.mxu0 %v1295
        %1553 = vmatmul.mubr.bf16.gmra.mxu0 %v1293
        %v1554 = vpop.f32.mrf.mxu0
        %v1555 = vadd.f32 %v1251, %v1554
        %v1556 = vpop.f32.mrf.mxu0
        %v1557 = vpop.f32.mrf.mxu0
        %v1558 = vadd.f32 %v1251, %v1557
        %v1559 = vpop.f32.mrf.mxu0
        %1560 = vmatprep.mubr.bf16.mxu0 %v1301
        %1561 = vmatmul.mubr.bf16.gmra.mxu0 %v1299
        %v1562 = vpop.f32.mrf.mxu0
        %v1563 = vadd.f32 %v1251, %v1562
        %v1564 = vpop.f32.mrf.mxu0
        %v1565 = vpop.f32.mrf.mxu0
        %v1566 = vadd.f32 %v1251, %v1565
        %v1567 = vpop.f32.mrf.mxu0
        %1568 = vdwg.mxu0
        %1569 = vmatprep.subr.bf16.mxu0 0
        %1570 = vmatpush1.bf16.msra.mxu0 %v1447
        %1571 = vmatprep.subr.bf16.mxu0 0
        %1572 = vmatpush1.bf16.msra.mxu0 %v1446
        %1573 = vmatprep.subr.bf16.mxu0 0
        %1574 = vmatpush1.bf16.msra.mxu0 %v1445
        %1575 = vmatprep.subr.bf16.mxu0 0
        %1576 = vmatpush1.bf16.msra.mxu0 %v1444
        %1577 = vmatprep.subr.bf16.mxu0 0
        %1578 = vmatpush1.bf16.msra.mxu0 %v1443
        %1579 = vmatprep.subr.bf16.mxu0 0
        %1580 = vmatpush1.bf16.msra.mxu0 %v1442
        %1581 = vmatprep.subr.bf16.mxu0 0
        %1582 = vmatpush1.bf16.msra.mxu0 %v1441
        %1583 = vmatprep.subr.bf16.mxu0 0
        %1584 = vmatpush1.bf16.msra.mxu0 %v1440
        %1585 = vmatprep.subr.bf16.mxu0 0
        %1586 = vmatpush2.bf16.msra.mxu0 0
        %1587 = vmatprep.subr.bf16.mxu0 0
        %1588 = vmatpush2.bf16.msra.mxu0 0
        %1589 = vmatprep.subr.bf16.mxu0 0
        %1590 = vmatpush2.bf16.msra.mxu0 0
        %1591 = vmatprep.subr.bf16.mxu0 0
        %1592 = vmatpush2.bf16.msra.mxu0 0
        %1593 = vmatprep.subr.bf16.mxu0 0
        %1594 = vmatpush2.bf16.msra.mxu0 0
        %1595 = vmatprep.subr.bf16.mxu0 0
        %1596 = vmatpush2.bf16.msra.mxu0 0
        %1597 = vmatprep.subr.bf16.mxu0 0
        %1598 = vmatpush2.bf16.msra.mxu0 0
        %1599 = vmatprep.subr.bf16.mxu0 0
        %1600 = vmatpush2.bf16.msra.mxu0 0
        %1601 = vmatprep.mubr.bf16.mxu0 0
        %1602 = vmatmul.mubr.bf16.gmra.mxu0 %v1261
        %v1603 = vpop.f32.mrf.mxu0
        %v1604 = vadd.f32 %v1507, %v1603
        %v1605 = vpop.f32.mrf.mxu0
        %v1606 = vpop.f32.mrf.mxu0
        %v1607 = vadd.f32 %v1510, %v1606
        %v1608 = vpop.f32.mrf.mxu0
        %1609 = vmatprep.mubr.bf16.mxu0 0
        %1610 = vmatmul.mubr.bf16.gmra.mxu0 %v1267
        %v1611 = vpop.f32.mrf.mxu0
        %v1612 = vadd.f32 %v1515, %v1611
        %v1613 = vpop.f32.mrf.mxu0
        %v1614 = vpop.f32.mrf.mxu0
        %v1615 = vadd.f32 %v1518, %v1614
        %v1616 = vpop.f32.mrf.mxu0
        %1617 = vmatprep.mubr.bf16.mxu0 0
        %1618 = vmatmul.mubr.bf16.gmra.mxu0 %v1273
        %v1619 = vpop.f32.mrf.mxu0
        %v1620 = vadd.f32 %v1523, %v1619
        %v1621 = vpop.f32.mrf.mxu0
        %v1622 = vpop.f32.mrf.mxu0
        %v1623 = vadd.f32 %v1526, %v1622
        %v1624 = vpop.f32.mrf.mxu0
        %1625 = vmatprep.mubr.bf16.mxu0 0
        %1626 = vmatmul.mubr.bf16.gmra.mxu0 %v1279
        %v1627 = vpop.f32.mrf.mxu0
        %v1628 = vadd.f32 %v1531, %v1627
        %v1629 = vpop.f32.mrf.mxu0
        %v1630 = vpop.f32.mrf.mxu0
        %v1631 = vadd.f32 %v1534, %v1630
        %v1632 = vpop.f32.mrf.mxu0
        %1633 = vmatprep.mubr.bf16.mxu0 0
        %1634 = vmatmul.mubr.bf16.gmra.mxu0 %v1285
        %v1635 = vpop.f32.mrf.mxu0
        %v1636 = vadd.f32 %v1539, %v1635
        %v1637 = vpop.f32.mrf.mxu0
        %v1638 = vpop.f32.mrf.mxu0
        %v1639 = vadd.f32 %v1542, %v1638
        %v1640 = vpop.f32.mrf.mxu0
        %1641 = vmatprep.mubr.bf16.mxu0 0
        %1642 = vmatmul.mubr.bf16.gmra.mxu0 %v1291
        %v1643 = vpop.f32.mrf.mxu0
        %v1644 = vadd.f32 %v1547, %v1643
        %v1645 = vpop.f32.mrf.mxu0
        %v1646 = vpop.f32.mrf.mxu0
        %v1647 = vadd.f32 %v1550, %v1646
        %v1648 = vpop.f32.mrf.mxu0
        %1649 = vmatprep.mubr.bf16.mxu0 0
        %1650 = vmatmul.mubr.bf16.gmra.mxu0 %v1297
        %v1651 = vpop.f32.mrf.mxu0
        %v1652 = vadd.f32 %v1555, %v1651
        %v1653 = vpop.f32.mrf.mxu0
        %v1654 = vpop.f32.mrf.mxu0
        %v1655 = vadd.f32 %v1558, %v1654
        %v1656 = vpop.f32.mrf.mxu0
        %1657 = vmatprep.mubr.bf16.mxu0 0
        %1658 = vmatmul.mubr.bf16.gmra.mxu0 %v1303
        %v1659 = vpop.f32.mrf.mxu0
        %v1660 = vadd.f32 %v1563, %v1659
        %v1661 = vpop.f32.mrf.mxu0
        %v1662 = vpop.f32.mrf.mxu0
        %v1663 = vadd.f32 %v1566, %v1662
        %v1664 = vpop.f32.mrf.mxu0
        %1665 = vdwg.mxu0
        %v1666 = vmax.f32 %v1604, 0.0
        %v1667 = vmax.f32 %v1607, 0.0
        %v1668 = vmax.f32 %v1612, 0.0
        %v1669 = vmax.f32 %v1615, 0.0
        %v1670 = vmax.f32 %v1620, 0.0
        %v1671 = vmax.f32 %v1623, 0.0
        %v1672 = vmax.f32 %v1628, 0.0
        %v1673 = vmax.f32 %v1631, 0.0
        %v1674 = vmax.f32 %v1636, 0.0
        %v1675 = vmax.f32 %v1639, 0.0
        %v1676 = vmax.f32 %v1644, 0.0
        %v1677 = vmax.f32 %v1647, 0.0
        %v1678 = vmax.f32 %v1652, 0.0
        %v1679 = vmax.f32 %v1655, 0.0
        %v1680 = vmax.f32 %v1660, 0.0
        %v1681 = vmax.f32 %v1663, 0.0
        %1682 = vxpose.xlu0.b32.start [1/16] %v1666, 128
        %1683 = vxpose.xlu0.b32.cont [2/16] %v1667, 128
        %1684 = vxpose.xlu0.b32.cont [3/16] %v1668, 128
        %1685 = vxpose.xlu0.b32.cont [4/16] %v1669, 128
        %1686 = vxpose.xlu0.b32.cont [5/16] %v1670, 128
        %1687 = vxpose.xlu0.b32.cont [6/16] %v1671, 128
        %1688 = vxpose.xlu0.b32.cont [7/16] %v1672, 128
        %1689 = vxpose.xlu0.b32.cont [8/16] %v1673, 128
        %1690 = vxpose.xlu0.b32.cont [9/16] %v1674, 128
        %1691 = vxpose.xlu0.b32.cont [10/16] %v1675, 128
        %1692 = vxpose.xlu0.b32.cont [11/16] %v1676, 128
        %1693 = vxpose.xlu0.b32.cont [12/16] %v1677, 128
        %1694 = vxpose.xlu0.b32.cont [13/16] %v1678, 128
        %1695 = vxpose.xlu0.b32.cont [14/16] %v1679, 128
        %1696 = vxpose.xlu0.b32.cont [15/16] %v1680, 128
        %1697 = vxpose.xlu0.b32.end [16/16] %v1681, 128
        %v1698 = vpop.trf.xlu0
        %v1699 = vpop.trf.xlu0
        %v1700 = vpop.trf.xlu0
        %v1701 = vpop.trf.xlu0
        %v1702 = vpop.trf.xlu0
        %v1703 = vpop.trf.xlu0
        %v1704 = vpop.trf.xlu0
        %v1705 = vpop.trf.xlu0
        %v1706 = vpop.trf.xlu0
        %v1707 = vpop.trf.xlu0
        %v1708 = vpop.trf.xlu0
        %v1709 = vpop.trf.xlu0
        %v1710 = vpop.trf.xlu0
        %v1711 = vpop.trf.xlu0
        %v1712 = vpop.trf.xlu0
        %v1713 = vpop.trf.xlu0
        %v1714 = vadd.f32 %v1698, %v294
        %v1715 = vmax.f32 %v1714, 0.0
        %1716 = vst [vmem:[%s286] sm:$0xff] %v1715
        %v1717 = vld [vmem:[#allocation3 + $0x44] sm:$0xc]
        %1718 = vst [vmem:[#allocation3 + $0x4] sm:$0xc] %v1717
        %s1719 = sand.u32 %s157, 1
        %s1720 = scalar_lea.sflag [#allocation6], %s1719
        %s1721 = sand.u32 %s157, 1
        %s1722 = smul.addr %s1721, 8
        %s1723 = scalar_lea.vmem [#allocation10], %s1722
        // Predicated region
        $region57: #{tpu_custom_call.1} parent=39 // pred_check
          %p1724 = pneg %p167
        $region58: #{tpu_custom_call.1} parent=39 // pred_check_branch
          %1726 = sbr.rel (%p1724) target = $region60
        $region59: #{tpu_custom_call.1} parent=39 // pred_region
          %s1728 = ssub.s32 128, 128
          %1729 = vsyncadd %s1720, %s1728
          %s1730 = smul.addr %s27, 3
          %s1731 = sadd.s32 %s28, %s1730
          %s1732 = smul.addr %s1731, 128
          %s1733 = scalar_lea.hbm %s5, %s1732
          %s1735 = sshll.u32 %s1723, 4
          %s1736 = int_to_ptr.vmem [resolvable:$true] %s1735
          %1738 = dma.vmem_to_hbm [thread:$0]  %s1736, 128, %s1733, %s1720
        $region60: #{tpu_custom_call.1} parent=39 // pred_fallthru
          _
      $region40: #{tpu_custom_call.1} parent=5 // pred_fallthru
        _
      %p1739 = scmp.le.s32.totalorder 2, %s18
      // Predicated region
      $region61: #{tpu_custom_call.1} parent=5 // pred_check
        %p1740 = pneg %p1739
      $region62: #{tpu_custom_call.1} parent=5 // pred_check_branch
        %1742 = sbr.rel (%p1740) target = $region64
      $region63: #{tpu_custom_call.1} parent=5 // pred_region
        %s1743 = ssub.s32 %s18, 2
        // Predicated region
        $region65: #{tpu_custom_call.1} parent=63 // pred_check
          %p1744 = pneg %p173
        $region66: #{tpu_custom_call.1} parent=63 // pred_check_branch
          %1746 = sbr.rel (%p1744) target = $region68
        $region67: #{tpu_custom_call.1} parent=63 // pred_region
          %s1747 = sand.u32 %s158, 1
          %s1748 = scalar_lea.sflag [#allocation6], %s1747
          %s1749 = sand.u32 %s158, 1
          %s1750 = smul.addr %s1749, 8
          %s1751 = scalar_lea.vmem [#allocation10], %s1750
          %1752 = dma.done %s1748, 128
        $region68: #{tpu_custom_call.1} parent=63 // pred_fallthru
          _
      $region64: #{tpu_custom_call.1} parent=5 // pred_fallthru
        _
    $region6: #{tpu_custom_call.1} parent=1 // loop_footer
      %s22 = sadd.s32 1, %s18
    $region7: #{tpu_custom_call.1} parent=1 // loop_footer_branch
      %17 = sbr.rel target = $region3
    $region8: #{tpu_custom_call.1} parent=1 // loop_exit
      _
    %1753 = vsyncpa [#allocation5], 1
    %s1754 = scalar_lea.sflag [#allocation5], 1
    %1755 = vsyncpa %s1754, 1
    %1756 = vsyncpa [#allocation8], 1
    %1757 = vsyncpa [#allocation6], 1
    %s1758 = scalar_lea.sflag [#allocation6], 1
    %1759 = vsyncpa %s1758, 1

</llo_original>
